<compile_context>
chip_gen: v7x
topology: tpu7x:2x2x1
jax: 0.10.0
libtpu: 0.0.40
codegen_flags: <defaults>
</compile_context>

<pallas_src>
import functools

import jax
import jax.numpy as jnp
from jax import lax
from jax.experimental import pallas as pl
from jax.experimental.pallas import tpu as pltpu

# ---------------- "cfg" constants (deterministic, in-script) ----------------
NUM_CLASSES = 8           # cfg.DATASET.NUM_CLASSES
POS_OVERLAP_THRESH = 0.5  # cfg.LOSS.POS_OVERLAP_THRESH
NEG_POS_RATIO = 3.0       # cfg.LOSS.NEG_POS_RATIO
LOC_WEIGHT = 1.0          # cfg.LOSS.LOC_WEIGHT
CONF_WEIGHT = 1.0         # cfg.LOSS.CONF_WEIGHT
VARIANCE = (0.1, 0.2)     # cfg.ENCODE.VARIANCE


# =========================== Pallas loss kernel =============================
def _ssd_loss_kernel(locs_ref, conf_ref, labels_ref, out_ref, *, negpos_ratio):
    TB, C, P = conf_ref.shape

    locs = locs_ref[...].astype(jnp.float32)          # (TB, 8, P) [loc_p;loc_t]
    conf = conf_ref[...].astype(jnp.float32)          # (TB, C, P)
    labels3 = labels_ref[...]                         # (TB, 1, P) int32
    labels2 = labels3[:, 0, :]                        # (TB, P)

    pos = labels2 > 0                                 # (TB, P)
    pos_f = pos.astype(jnp.float32)
    num_pos_row = jnp.sum(pos_f, axis=1, keepdims=True)        # (TB, 1)

    # --- localization loss: smooth L1 over positive priors (sum reduction) --
    diff = locs[:, 0:4, :] - locs[:, 4:8, :]          # (TB, 4, P)
    ad = jnp.abs(diff)
    sl1 = jnp.where(ad < 1.0, 0.5 * ad * ad, ad - 0.5)
    loss_l = jnp.sum(jnp.sum(sl1, axis=1) * pos_f)

    # --- per-prior cross entropy: log_sum_exp(conf) - conf[label] -----------
    # Class axis is on sublanes (size C); priors stay lane-dense.
    class_ids = lax.broadcasted_iota(jnp.int32, (TB, C, P), 1)
    onehot = class_ids == labels3                               # (TB, C, P)
    conf_at = jnp.sum(jnp.where(onehot, conf, 0.0), axis=1)     # (TB, P)
    m = jnp.max(conf, axis=1, keepdims=True)                    # (TB, 1, P)
    sum_exp = jnp.sum(jnp.exp(conf - m), axis=1)                # (TB, P)
    ce_all = m[:, 0, :] + jnp.log(sum_exp) - conf_at            # (TB, P)

    # --- hard negative mining: per-row k-th largest negative CE -------------
    # 2-D (TB, P) layout: every compare/select/lane-reduce fills the vreg.
    # k-th value found via a 31-step bit binary search on the (non-negative)
    # float bit pattern; neg <=> lc_bits >= threshold.  Ties only happen at
    # lc == 0 (positives / zero CE) which contribute 0 to the sum, so the
    # selection matches the argsort-based reference.
    lc = jnp.where(pos, 0.0, ce_all)                            # (TB, P), >= 0
    lc_bits = pltpu.bitcast(lc, jnp.int32)                      # monotone view
    num_neg_row = jnp.minimum(negpos_ratio * num_pos_row, float(P - 1))

    def search_bit(i, t):                                       # t: (TB, 1) i32
        bit = 30 - i
        cand = t | lax.shift_left(jnp.int32(1), bit.astype(jnp.int32))
        cnt = jnp.sum((lc_bits >= cand).astype(jnp.float32),
                      axis=1, keepdims=True)                    # (TB, 1)
        return jnp.where(cnt >= num_neg_row, cand, t)

    # Fixed 31-trip loop, fully unrolled for LLO scheduler visibility.
    thresh = lax.fori_loop(0, 31, search_bit,
                           jnp.zeros((TB, 1), jnp.int32), unroll=True)
    neg = lc_bits >= thresh                                     # (TB, P)
    select = jnp.logical_or(pos, neg)

    # --- classification loss on selected (pos | neg) priors, sum reduction --
    loss_c = jnp.sum(jnp.where(select, ce_all, 0.0))
    num_pos_total = jnp.sum(num_pos_row)

    # --- pack the three scalars into one lane-dense (1, 8, 128) output tile -
    rows = lax.broadcasted_iota(jnp.int32, (1, 8, 128), 1)
    out_ref[...] = jnp.where(rows == 0, loss_l,
                   jnp.where(rows == 1, loss_c,
                   jnp.where(rows == 2, num_pos_total, 0.0)))


def _vmem_limit_bytes():
    try:
        cap = int(pltpu.get_tpu_info().vmem_capacity_bytes)
    except Exception:
        cap = 64 * 1024 * 1024   # conservative (v7x-sized) fallback
    return min((cap * 3) // 4, 96 * 1024 * 1024)


def ssd_losses_pallas(loc_data, loc_t, conf_data, conf_t):
    B, P, _ = loc_data.shape
    C = conf_data.shape[-1]

    # Lane-dense layouts: prior axis last (maps to the 128-lane axis).
    # loc_p and loc_t are fused into one (B, 8, P) slab -> single DMA stream.
    # TODO(synk): the conf transpose is an extra HBM pass over the largest
    # tensor; eliminating it requires the upstream model to emit (B, C, P)
    # logits directly (out of scope for this self-contained script).
    loc_p_t = jnp.transpose(loc_data, (0, 2, 1))                # (B, 4, P)
    loc_t_t = jnp.transpose(loc_t, (0, 2, 1))                   # (B, 4, P)
    locs = jnp.concatenate([loc_p_t, loc_t_t], axis=1)          # (B, 8, P)
    conf_tr = jnp.transpose(conf_data, (0, 2, 1))               # (B, C, P), keeps dtype (bf16 stays bf16)
    labels = conf_t.reshape(B, 1, P).astype(jnp.int32)          # (B, 1, P)

    vmem_limit = _vmem_limit_bytes()

    # Batch-block size: biggest TB <= 8 that fits the VMEM budget
    # (double-buffered inputs + f32 intermediates), but keep nblk >= 2 when
    # B >= 2 so the 'parallel' grid axis can split across both TensorCores
    # on megacore parts (free on single-core parts).
    conf_bytes = jnp.dtype(conf_tr.dtype).itemsize
    per_row = P * (2 * 8 * 4 + 2 * 4 + 2 * C * conf_bytes + 4 * C * 4 + 32)
    budget = int(vmem_limit * 0.6)
    TB = max(1, min(8, B, budget // max(per_row, 1)))
    if B >= 2:
        TB = min(TB, -(-B // 2))
    B_pad = -(-B // TB) * TB
    if B_pad != B:
        pad = B_pad - B
        # Padded rows have labels==0 -> num_pos=0 -> contribute 0 to all sums.
        locs = jnp.pad(locs, ((0, pad), (0, 0), (0, 0)))
        conf_tr = jnp.pad(conf_tr, ((0, pad), (0, 0), (0, 0)))
        labels = jnp.pad(labels, ((0, pad), (0, 0), (0, 0)))
    nblk = B_pad // TB

    kernel = functools.partial(_ssd_loss_kernel, negpos_ratio=NEG_POS_RATIO)

    out = pl.pallas_call(
        kernel,
        out_shape=jax.ShapeDtypeStruct((nblk, 8, 128), jnp.float32),
        grid_spec=pltpu.PrefetchScalarGridSpec(
            num_scalar_prefetch=0,
            grid=(nblk,),
            in_specs=[
                pl.BlockSpec((TB, 8, P), lambda b: (b, 0, 0)),
                pl.BlockSpec((TB, C, P), lambda b: (b, 0, 0)),
                pl.BlockSpec((TB, 1, P), lambda b: (b, 0, 0)),
            ],
            out_specs=pl.BlockSpec((1, 8, 128), lambda b: (b, 0, 0)),
        ),
        compiler_params=pltpu.CompilerParams(
            dimension_semantics=("parallel",),
            vmem_limit_bytes=vmem_limit),
    )(locs, conf_tr, labels)

    # NOTE: matches the PyTorch module exactly (divides by N even if N == 0).
    N = jnp.sum(out[:, 2, 0])
    loss_l = jnp.sum(out[:, 0, 0]) / N
    loss_c = jnp.sum(out[:, 1, 0]) / N
    return loss_l * LOC_WEIGHT, loss_c * CONF_WEIGHT


# ====================== matching glue (plain JAX) ===========================
# TODO(synk): IoU matching / box encoding is data-dependent gather/scatter
# (argmax + fancy indexing); kept in plain JAX rather than faking it in Pallas.
def point_form(boxes):
    return jnp.concatenate([boxes[:, :2] - boxes[:, 2:] / 2.0,
                            boxes[:, :2] + boxes[:, 2:] / 2.0], axis=1)


def jaccard(box_a, box_b):
    max_xy = jnp.minimum(box_a[:, None, 2:], box_b[None, :, 2:])
    min_xy = jnp.maximum(box_a[:, None, :2], box_b[None, :, :2])
    wh = jnp.maximum(max_xy - min_xy, 0.0)
    inter = wh[..., 0] * wh[..., 1]
    area_a = ((box_a[:, 2] - box_a[:, 0]) * (box_a[:, 3] - box_a[:, 1]))[:, None]
    area_b = ((box_b[:, 2] - box_b[:, 0]) * (box_b[:, 3] - box_b[:, 1]))[None, :]
    return inter / (area_a + area_b - inter)


def encode(matched, priors, variances):
    g_cxcy = (matched[:, :2] + matched[:, 2:]) / 2.0 - priors[:, :2]
    g_cxcy = g_cxcy / (variances[0] * priors[:, 2:])
    g_wh = (matched[:, 2:] - matched[:, :2]) / priors[:, 2:]
    g_wh = jnp.log(g_wh) / variances[1]
    return jnp.concatenate([g_cxcy, g_wh], axis=1)


def match_single(truths, labels, priors, threshold, variances):
    overlaps = jaccard(truths, point_form(priors))           # (O, P)
    best_prior_idx = jnp.argmax(overlaps, axis=1)            # (O,)
    best_truth_overlap = jnp.max(overlaps, axis=0)           # (P,)
    best_truth_idx = jnp.argmax(overlaps, axis=0)            # (P,)
    best_truth_overlap = best_truth_overlap.at[best_prior_idx].set(2.0)
    best_truth_idx = best_truth_idx.at[best_prior_idx].set(
        jnp.arange(truths.shape[0]))
    matches = truths[best_truth_idx]                         # (P, 4)
    conf = labels[best_truth_idx].astype(jnp.int32) + 1
    conf = jnp.where(best_truth_overlap < threshold, 0, conf)
    loc = encode(matches, priors, variances)
    return loc, conf


def generalized_ssd_loss_forward(predictions, targets):
    loc_data, conf_data, priors = predictions
    priors = priors[:loc_data.shape[1], :]
    truths = targets[:, :, :-1]
    labels = targets[:, :, -1]
    loc_t, conf_t = jax.vmap(
        lambda t, l: match_single(t, l, priors, POS_OVERLAP_THRESH, VARIANCE)
    )(truths, labels)
    return ssd_losses_pallas(loc_data, loc_t, conf_data, conf_t)


# ======================== pure-JAX reference =================================
def reference_losses(loc_data, loc_t, conf_data, conf_t):
    B, P, _ = loc_data.shape
    pos = conf_t > 0
    ad = jnp.abs(loc_data - loc_t)
    sl1 = jnp.where(ad < 1.0, 0.5 * ad * ad, ad - 0.5).sum(-1)
    loss_l = jnp.sum(sl1 * pos)
    lse = jax.scipy.special.logsumexp(conf_data, axis=-1)
    conf_at = jnp.take_along_axis(conf_data, conf_t[..., None], axis=-1)[..., 0]
    ce = lse - conf_at
    lc = jnp.where(pos, 0.0, ce)
    order = jnp.argsort(-lc, axis=1)
    rank = jnp.argsort(order, axis=1)
    num_pos = pos.sum(1, keepdims=True)
    num_neg = jnp.minimum(NEG_POS_RATIO * num_pos, P - 1)
    neg = rank < num_neg
    loss_c = jnp.sum(jnp.where(pos | neg, ce, 0.0))
    N = num_pos.sum()
    return loss_l / N * LOC_WEIGHT, loss_c / N * CONF_WEIGHT


# ================================ main =======================================
if __name__ == "__main__":
    key = jax.random.PRNGKey(0)
    B, P, C, O = 2, 128, NUM_CLASSES, 4

    k1, k2, k3, k4, k5 = jax.random.split(key, 5)
    loc_data = 0.1 * jax.random.normal(k1, (B, P, 4), jnp.float32)
    conf_data = jax.random.normal(k2, (B, P, C), jnp.float32)

    # priors: 8x16 grid of center-form boxes, fixed size 0.2
    gy, gx = jnp.meshgrid(jnp.linspace(0.05, 0.95, 8),
                          jnp.linspace(0.05, 0.95, 16), indexing="ij")
    priors = jnp.stack([gx.reshape(-1), gy.reshape(-1),
                        jnp.full((P,), 0.2), jnp.full((P,), 0.2)], axis=1)

    # targets: (B, O, 5) -> corner-form boxes + label
    cxy = 0.2 + 0.6 * jax.random.uniform(k3, (B, O, 2))
    wh = 0.1 + 0.3 * jax.random.uniform(k4, (B, O, 2))
    boxes = jnp.concatenate([cxy - wh / 2.0, cxy + wh / 2.0], axis=-1)
    gt_labels = jax.random.randint(k5, (B, O, 1), 0, C - 1).astype(jnp.float32)
    targets = jnp.concatenate([boxes, gt_labels], axis=-1)

    loss_l, loss_c = generalized_ssd_loss_forward(
        (loc_data, conf_data, priors), targets)
    jax.block_until_ready((loss_l, loss_c))

    # cross-check against pure-JAX reference using the same matching
    truths = targets[:, :, :-1]
    labels = targets[:, :, -1]
    loc_t, conf_t = jax.vmap(
        lambda t, l: match_single(t, l, priors, POS_OVERLAP_THRESH, VARIANCE)
    )(truths, labels)
    ref_l, ref_c = reference_losses(loc_data, loc_t, conf_data, conf_t)

    assert jnp.allclose(loss_l, ref_l, rtol=1e-3, atol=1e-4), (loss_l, ref_l)
    assert jnp.allclose(loss_c, ref_c, rtol=1e-3, atol=1e-4), (loss_c, ref_c)
    print("KERNEL_OK")
</pallas_src>

<mosaic_0001>
module attributes {stable_mosaic.version = 11 : i64} {
  func.func @_ssd_loss_kernel(%arg0: i32, %arg1: memref<1x8x128xf32, #tpu.memory_space<vmem>>, %arg2: memref<1x8x128xf32, #tpu.memory_space<vmem>>, %arg3: memref<1x1x128xi32, #tpu.memory_space<vmem>>, %arg4: memref<1x8x128xf32, #tpu.memory_space<vmem>>) attributes {dimension_semantics = [#tpu.dimension_semantics<parallel>], iteration_bounds = array<i64: 2>, scalar_prefetch = 0 : i64, scratch_operands = 0 : i64, tpu.core_type = #tpu.core_type<tc>, window_params = [{transform_indices = @transform_0, window_bounds = array<i64: 1, 8, 128>}, {transform_indices = @transform_1, window_bounds = array<i64: 1, 8, 128>}, {transform_indices = @transform_2, window_bounds = array<i64: 1, 1, 128>}, {transform_indices = @transform_3, window_bounds = array<i64: 1, 8, 128>}]} {
    %c0 = arith.constant 0 : index
    %c0_0 = arith.constant 0 : index
    %c0_1 = arith.constant 0 : index
    %0 = vector.load %arg1[%c0, %c0_0, %c0_1] : memref<1x8x128xf32, #tpu.memory_space<vmem>>, vector<1x8x128xf32>
    %c0_2 = arith.constant 0 : index
    %c0_3 = arith.constant 0 : index
    %c0_4 = arith.constant 0 : index
    %1 = vector.load %arg2[%c0_2, %c0_3, %c0_4] : memref<1x8x128xf32, #tpu.memory_space<vmem>>, vector<1x8x128xf32>
    %c0_5 = arith.constant 0 : index
    %c0_6 = arith.constant 0 : index
    %c0_7 = arith.constant 0 : index
    %2 = vector.load %arg3[%c0_5, %c0_6, %c0_7] : memref<1x1x128xi32, #tpu.memory_space<vmem>>, vector<1x1x128xi32>
    %3 = vector.shape_cast %2 : vector<1x1x128xi32> to vector<1x128xi32>
    %c0_i32 = arith.constant 0 : i32
    %4 = vector.broadcast %c0_i32 : i32 to vector<1x128xi32>
    %5 = arith.cmpi sgt, %3, %4 : vector<1x128xi32>
    %6 = arith.extui %5 : vector<1x128xi1> to vector<1x128xi32>
    %7 = arith.sitofp %6 : vector<1x128xi32> to vector<1x128xf32>
    %cst = arith.constant dense<0.000000e+00> : vector<1xf32>
    %8 = vector.multi_reduction <add>, %7, %cst [1] : vector<1x128xf32> to vector<1xf32>
    %9 = vector.shape_cast %8 : vector<1xf32> to vector<1x1xf32>
    %10 = vector.extract_strided_slice %0 {offsets = [0, 0, 0], sizes = [1, 4, 128], strides = [1, 1, 1]} : vector<1x8x128xf32> to vector<1x4x128xf32>
    %11 = vector.extract_strided_slice %0 {offsets = [0, 4, 0], sizes = [1, 4, 128], strides = [1, 1, 1]} : vector<1x8x128xf32> to vector<1x4x128xf32>
    %12 = arith.subf %10, %11 : vector<1x4x128xf32>
    %13 = math.absf %12 : vector<1x4x128xf32>
    %cst_8 = arith.constant 1.000000e+00 : f32
    %14 = vector.broadcast %cst_8 : f32 to vector<1x4x128xf32>
    %15 = arith.cmpf olt, %13, %14 : vector<1x4x128xf32>
    %cst_9 = arith.constant 5.000000e-01 : f32
    %16 = vector.broadcast %cst_9 : f32 to vector<1x4x128xf32>
    %17 = arith.mulf %16, %13 : vector<1x4x128xf32>
    %18 = arith.mulf %17, %13 : vector<1x4x128xf32>
    %cst_10 = arith.constant 5.000000e-01 : f32
    %19 = vector.broadcast %cst_10 : f32 to vector<1x4x128xf32>
    %20 = arith.subf %13, %19 : vector<1x4x128xf32>
    %21 = arith.select %15, %18, %20 : vector<1x4x128xi1>, vector<1x4x128xf32>
    %cst_11 = arith.constant dense<0.000000e+00> : vector<1x128xf32>
    %22 = vector.multi_reduction <add>, %21, %cst_11 [1] : vector<1x4x128xf32> to vector<1x128xf32>
    %23 = arith.mulf %22, %7 : vector<1x128xf32>
    %24 = vector.shape_cast %23 : vector<1x128xf32> to vector<1x1x128xf32>
    %cst_12 = arith.constant dense<0.000000e+00> : vector<1xf32>
    %25 = vector.multi_reduction <add>, %24, %cst_12 [1, 2] : vector<1x1x128xf32> to vector<1xf32>
    %26 = vector.shape_cast %25 : vector<1xf32> to vector<1x1x1xf32>
    %27 = vector.extract %26[0, 0, 0] : f32 from vector<1x1x1xf32>
    %28 = tpu.iota {dimensions = array<i32: 1>} : vector<1x8x128xi32>
    %29 = vector.broadcast %2 : vector<1x1x128xi32> to vector<1x8x128xi32>
    %30 = arith.cmpi eq, %28, %29 : vector<1x8x128xi32>
    %cst_13 = arith.constant 0.000000e+00 : f32
    %31 = vector.broadcast %cst_13 : f32 to vector<1x8x128xf32>
    %32 = arith.select %30, %1, %31 : vector<1x8x128xi1>, vector<1x8x128xf32>
    %cst_14 = arith.constant dense<0.000000e+00> : vector<1x128xf32>
    %33 = vector.multi_reduction <add>, %32, %cst_14 [1] : vector<1x8x128xf32> to vector<1x128xf32>
    %cst_15 = arith.constant dense<0xFF800000> : vector<1x128xf32>
    %34 = vector.multi_reduction <maximumf>, %1, %cst_15 [1] : vector<1x8x128xf32> to vector<1x128xf32>
    %35 = vector.shape_cast %34 : vector<1x128xf32> to vector<1x1x128xf32>
    %36 = vector.broadcast %35 : vector<1x1x128xf32> to vector<1x8x128xf32>
    %37 = arith.subf %1, %36 : vector<1x8x128xf32>
    %38 = math.exp %37 : vector<1x8x128xf32>
    %cst_16 = arith.constant dense<0.000000e+00> : vector<1x128xf32>
    %39 = vector.multi_reduction <add>, %38, %cst_16 [1] : vector<1x8x128xf32> to vector<1x128xf32>
    %40 = vector.shape_cast %35 : vector<1x1x128xf32> to vector<1x128xf32>
    %41 = math.log %39 : vector<1x128xf32>
    %42 = arith.addf %40, %41 : vector<1x128xf32>
    %43 = arith.subf %42, %33 : vector<1x128xf32>
    %cst_17 = arith.constant 0.000000e+00 : f32
    %44 = vector.broadcast %cst_17 : f32 to vector<1x128xf32>
    %45 = arith.select %5, %44, %43 : vector<1x128xi1>, vector<1x128xf32>
    %46 = tpu.bitcast %45 : vector<1x128xf32> -> vector<1x128xi32>
    %cst_18 = arith.constant 3.000000e+00 : f32
    %47 = vector.broadcast %cst_18 : f32 to vector<1x1xf32>
    %48 = arith.mulf %47, %9 : vector<1x1xf32>
    %cst_19 = arith.constant 1.270000e+02 : f32
    %49 = vector.broadcast %cst_19 : f32 to vector<1x1xf32>
    %50 = arith.minimumf %48, %49 : vector<1x1xf32>
    %c0_i32_20 = arith.constant 0 : i32
    %51 = vector.broadcast %c0_i32_20 : i32 to vector<1x1xi32>
    %c0_i32_21 = arith.constant 0 : i32
    %c30_i32 = arith.constant 30 : i32
    %52 = arith.subi %c30_i32, %c0_i32_21 : i32
    %c1_i32 = arith.constant 1 : i32
    %53 = arith.shli %c1_i32, %52 : i32
    %54 = vector.broadcast %53 : i32 to vector<1x1xi32>
    %55 = arith.ori %51, %54 : vector<1x1xi32>
    %56 = vector.broadcast %55 : vector<1x1xi32> to vector<1x128xi32>
    %57 = arith.cmpi sge, %46, %56 : vector<1x128xi32>
    %58 = arith.extui %57 : vector<1x128xi1> to vector<1x128xi32>
    %59 = arith.sitofp %58 : vector<1x128xi32> to vector<1x128xf32>
    %cst_22 = arith.constant dense<0.000000e+00> : vector<1xf32>
    %60 = vector.multi_reduction <add>, %59, %cst_22 [1] : vector<1x128xf32> to vector<1xf32>
    %61 = vector.shape_cast %60 : vector<1xf32> to vector<1x1xf32>
    %62 = arith.cmpf oge, %61, %50 : vector<1x1xf32>
    %63 = arith.select %62, %55, %51 : vector<1x1xi1>, vector<1x1xi32>
    %c1_i32_23 = arith.constant 1 : i32
    %c30_i32_24 = arith.constant 30 : i32
    %64 = arith.subi %c30_i32_24, %c1_i32_23 : i32
    %c1_i32_25 = arith.constant 1 : i32
    %65 = arith.shli %c1_i32_25, %64 : i32
    %66 = vector.broadcast %65 : i32 to vector<1x1xi32>
    %67 = arith.ori %63, %66 : vector<1x1xi32>
    %68 = vector.broadcast %67 : vector<1x1xi32> to vector<1x128xi32>
    %69 = arith.cmpi sge, %46, %68 : vector<1x128xi32>
    %70 = arith.extui %69 : vector<1x128xi1> to vector<1x128xi32>
    %71 = arith.sitofp %70 : vector<1x128xi32> to vector<1x128xf32>
    %cst_26 = arith.constant dense<0.000000e+00> : vector<1xf32>
    %72 = vector.multi_reduction <add>, %71, %cst_26 [1] : vector<1x128xf32> to vector<1xf32>
    %73 = vector.shape_cast %72 : vector<1xf32> to vector<1x1xf32>
    %74 = arith.cmpf oge, %73, %50 : vector<1x1xf32>
    %75 = arith.select %74, %67, %63 : vector<1x1xi1>, vector<1x1xi32>
    %c2_i32 = arith.constant 2 : i32
    %c30_i32_27 = arith.constant 30 : i32
    %76 = arith.subi %c30_i32_27, %c2_i32 : i32
    %c1_i32_28 = arith.constant 1 : i32
    %77 = arith.shli %c1_i32_28, %76 : i32
    %78 = vector.broadcast %77 : i32 to vector<1x1xi32>
    %79 = arith.ori %75, %78 : vector<1x1xi32>
    %80 = vector.broadcast %79 : vector<1x1xi32> to vector<1x128xi32>
    %81 = arith.cmpi sge, %46, %80 : vector<1x128xi32>
    %82 = arith.extui %81 : vector<1x128xi1> to vector<1x128xi32>
    %83 = arith.sitofp %82 : vector<1x128xi32> to vector<1x128xf32>
    %cst_29 = arith.constant dense<0.000000e+00> : vector<1xf32>
    %84 = vector.multi_reduction <add>, %83, %cst_29 [1] : vector<1x128xf32> to vector<1xf32>
    %85 = vector.shape_cast %84 : vector<1xf32> to vector<1x1xf32>
    %86 = arith.cmpf oge, %85, %50 : vector<1x1xf32>
    %87 = arith.select %86, %79, %75 : vector<1x1xi1>, vector<1x1xi32>
    %c3_i32 = arith.constant 3 : i32
    %c30_i32_30 = arith.constant 30 : i32
    %88 = arith.subi %c30_i32_30, %c3_i32 : i32
    %c1_i32_31 = arith.constant 1 : i32
    %89 = arith.shli %c1_i32_31, %88 : i32
    %90 = vector.broadcast %89 : i32 to vector<1x1xi32>
    %91 = arith.ori %87, %90 : vector<1x1xi32>
    %92 = vector.broadcast %91 : vector<1x1xi32> to vector<1x128xi32>
    %93 = arith.cmpi sge, %46, %92 : vector<1x128xi32>
    %94 = arith.extui %93 : vector<1x128xi1> to vector<1x128xi32>
    %95 = arith.sitofp %94 : vector<1x128xi32> to vector<1x128xf32>
    %cst_32 = arith.constant dense<0.000000e+00> : vector<1xf32>
    %96 = vector.multi_reduction <add>, %95, %cst_32 [1] : vector<1x128xf32> to vector<1xf32>
    %97 = vector.shape_cast %96 : vector<1xf32> to vector<1x1xf32>
    %98 = arith.cmpf oge, %97, %50 : vector<1x1xf32>
    %99 = arith.select %98, %91, %87 : vector<1x1xi1>, vector<1x1xi32>
    %c4_i32 = arith.constant 4 : i32
    %c30_i32_33 = arith.constant 30 : i32
    %100 = arith.subi %c30_i32_33, %c4_i32 : i32
    %c1_i32_34 = arith.constant 1 : i32
    %101 = arith.shli %c1_i32_34, %100 : i32
    %102 = vector.broadcast %101 : i32 to vector<1x1xi32>
    %103 = arith.ori %99, %102 : vector<1x1xi32>
    %104 = vector.broadcast %103 : vector<1x1xi32> to vector<1x128xi32>
    %105 = arith.cmpi sge, %46, %104 : vector<1x128xi32>
    %106 = arith.extui %105 : vector<1x128xi1> to vector<1x128xi32>
    %107 = arith.sitofp %106 : vector<1x128xi32> to vector<1x128xf32>
    %cst_35 = arith.constant dense<0.000000e+00> : vector<1xf32>
    %108 = vector.multi_reduction <add>, %107, %cst_35 [1] : vector<1x128xf32> to vector<1xf32>
    %109 = vector.shape_cast %108 : vector<1xf32> to vector<1x1xf32>
    %110 = arith.cmpf oge, %109, %50 : vector<1x1xf32>
    %111 = arith.select %110, %103, %99 : vector<1x1xi1>, vector<1x1xi32>
    %c5_i32 = arith.constant 5 : i32
    %c30_i32_36 = arith.constant 30 : i32
    %112 = arith.subi %c30_i32_36, %c5_i32 : i32
    %c1_i32_37 = arith.constant 1 : i32
    %113 = arith.shli %c1_i32_37, %112 : i32
    %114 = vector.broadcast %113 : i32 to vector<1x1xi32>
    %115 = arith.ori %111, %114 : vector<1x1xi32>
    %116 = vector.broadcast %115 : vector<1x1xi32> to vector<1x128xi32>
    %117 = arith.cmpi sge, %46, %116 : vector<1x128xi32>
    %118 = arith.extui %117 : vector<1x128xi1> to vector<1x128xi32>
    %119 = arith.sitofp %118 : vector<1x128xi32> to vector<1x128xf32>
    %cst_38 = arith.constant dense<0.000000e+00> : vector<1xf32>
    %120 = vector.multi_reduction <add>, %119, %cst_38 [1] : vector<1x128xf32> to vector<1xf32>
    %121 = vector.shape_cast %120 : vector<1xf32> to vector<1x1xf32>
    %122 = arith.cmpf oge, %121, %50 : vector<1x1xf32>
    %123 = arith.select %122, %115, %111 : vector<1x1xi1>, vector<1x1xi32>
    %c6_i32 = arith.constant 6 : i32
    %c30_i32_39 = arith.constant 30 : i32
    %124 = arith.subi %c30_i32_39, %c6_i32 : i32
    %c1_i32_40 = arith.constant 1 : i32
    %125 = arith.shli %c1_i32_40, %124 : i32
    %126 = vector.broadcast %125 : i32 to vector<1x1xi32>
    %127 = arith.ori %123, %126 : vector<1x1xi32>
    %128 = vector.broadcast %127 : vector<1x1xi32> to vector<1x128xi32>
    %129 = arith.cmpi sge, %46, %128 : vector<1x128xi32>
    %130 = arith.extui %129 : vector<1x128xi1> to vector<1x128xi32>
    %131 = arith.sitofp %130 : vector<1x128xi32> to vector<1x128xf32>
    %cst_41 = arith.constant dense<0.000000e+00> : vector<1xf32>
    %132 = vector.multi_reduction <add>, %131, %cst_41 [1] : vector<1x128xf32> to vector<1xf32>
    %133 = vector.shape_cast %132 : vector<1xf32> to vector<1x1xf32>
    %134 = arith.cmpf oge, %133, %50 : vector<1x1xf32>
    %135 = arith.select %134, %127, %123 : vector<1x1xi1>, vector<1x1xi32>
    %c7_i32 = arith.constant 7 : i32
    %c30_i32_42 = arith.constant 30 : i32
    %136 = arith.subi %c30_i32_42, %c7_i32 : i32
    %c1_i32_43 = arith.constant 1 : i32
    %137 = arith.shli %c1_i32_43, %136 : i32
    %138 = vector.broadcast %137 : i32 to vector<1x1xi32>
    %139 = arith.ori %135, %138 : vector<1x1xi32>
    %140 = vector.broadcast %139 : vector<1x1xi32> to vector<1x128xi32>
    %141 = arith.cmpi sge, %46, %140 : vector<1x128xi32>
    %142 = arith.extui %141 : vector<1x128xi1> to vector<1x128xi32>
    %143 = arith.sitofp %142 : vector<1x128xi32> to vector<1x128xf32>
    %cst_44 = arith.constant dense<0.000000e+00> : vector<1xf32>
    %144 = vector.multi_reduction <add>, %143, %cst_44 [1] : vector<1x128xf32> to vector<1xf32>
    %145 = vector.shape_cast %144 : vector<1xf32> to vector<1x1xf32>
    %146 = arith.cmpf oge, %145, %50 : vector<1x1xf32>
    %147 = arith.select %146, %139, %135 : vector<1x1xi1>, vector<1x1xi32>
    %c8_i32 = arith.constant 8 : i32
    %c30_i32_45 = arith.constant 30 : i32
    %148 = arith.subi %c30_i32_45, %c8_i32 : i32
    %c1_i32_46 = arith.constant 1 : i32
    %149 = arith.shli %c1_i32_46, %148 : i32
    %150 = vector.broadcast %149 : i32 to vector<1x1xi32>
    %151 = arith.ori %147, %150 : vector<1x1xi32>
    %152 = vector.broadcast %151 : vector<1x1xi32> to vector<1x128xi32>
    %153 = arith.cmpi sge, %46, %152 : vector<1x128xi32>
    %154 = arith.extui %153 : vector<1x128xi1> to vector<1x128xi32>
    %155 = arith.sitofp %154 : vector<1x128xi32> to vector<1x128xf32>
    %cst_47 = arith.constant dense<0.000000e+00> : vector<1xf32>
    %156 = vector.multi_reduction <add>, %155, %cst_47 [1] : vector<1x128xf32> to vector<1xf32>
    %157 = vector.shape_cast %156 : vector<1xf32> to vector<1x1xf32>
    %158 = arith.cmpf oge, %157, %50 : vector<1x1xf32>
    %159 = arith.select %158, %151, %147 : vector<1x1xi1>, vector<1x1xi32>
    %c9_i32 = arith.constant 9 : i32
    %c30_i32_48 = arith.constant 30 : i32
    %160 = arith.subi %c30_i32_48, %c9_i32 : i32
    %c1_i32_49 = arith.constant 1 : i32
    %161 = arith.shli %c1_i32_49, %160 : i32
    %162 = vector.broadcast %161 : i32 to vector<1x1xi32>
    %163 = arith.ori %159, %162 : vector<1x1xi32>
    %164 = vector.broadcast %163 : vector<1x1xi32> to vector<1x128xi32>
    %165 = arith.cmpi sge, %46, %164 : vector<1x128xi32>
    %166 = arith.extui %165 : vector<1x128xi1> to vector<1x128xi32>
    %167 = arith.sitofp %166 : vector<1x128xi32> to vector<1x128xf32>
    %cst_50 = arith.constant dense<0.000000e+00> : vector<1xf32>
    %168 = vector.multi_reduction <add>, %167, %cst_50 [1] : vector<1x128xf32> to vector<1xf32>
    %169 = vector.shape_cast %168 : vector<1xf32> to vector<1x1xf32>
    %170 = arith.cmpf oge, %169, %50 : vector<1x1xf32>
    %171 = arith.select %170, %163, %159 : vector<1x1xi1>, vector<1x1xi32>
    %c10_i32 = arith.constant 10 : i32
    %c30_i32_51 = arith.constant 30 : i32
    %172 = arith.subi %c30_i32_51, %c10_i32 : i32
    %c1_i32_52 = arith.constant 1 : i32
    %173 = arith.shli %c1_i32_52, %172 : i32
    %174 = vector.broadcast %173 : i32 to vector<1x1xi32>
    %175 = arith.ori %171, %174 : vector<1x1xi32>
    %176 = vector.broadcast %175 : vector<1x1xi32> to vector<1x128xi32>
    %177 = arith.cmpi sge, %46, %176 : vector<1x128xi32>
    %178 = arith.extui %177 : vector<1x128xi1> to vector<1x128xi32>
    %179 = arith.sitofp %178 : vector<1x128xi32> to vector<1x128xf32>
    %cst_53 = arith.constant dense<0.000000e+00> : vector<1xf32>
    %180 = vector.multi_reduction <add>, %179, %cst_53 [1] : vector<1x128xf32> to vector<1xf32>
    %181 = vector.shape_cast %180 : vector<1xf32> to vector<1x1xf32>
    %182 = arith.cmpf oge, %181, %50 : vector<1x1xf32>
    %183 = arith.select %182, %175, %171 : vector<1x1xi1>, vector<1x1xi32>
    %c11_i32 = arith.constant 11 : i32
    %c30_i32_54 = arith.constant 30 : i32
    %184 = arith.subi %c30_i32_54, %c11_i32 : i32
    %c1_i32_55 = arith.constant 1 : i32
    %185 = arith.shli %c1_i32_55, %184 : i32
    %186 = vector.broadcast %185 : i32 to vector<1x1xi32>
    %187 = arith.ori %183, %186 : vector<1x1xi32>
    %188 = vector.broadcast %187 : vector<1x1xi32> to vector<1x128xi32>
    %189 = arith.cmpi sge, %46, %188 : vector<1x128xi32>
    %190 = arith.extui %189 : vector<1x128xi1> to vector<1x128xi32>
    %191 = arith.sitofp %190 : vector<1x128xi32> to vector<1x128xf32>
    %cst_56 = arith.constant dense<0.000000e+00> : vector<1xf32>
    %192 = vector.multi_reduction <add>, %191, %cst_56 [1] : vector<1x128xf32> to vector<1xf32>
    %193 = vector.shape_cast %192 : vector<1xf32> to vector<1x1xf32>
    %194 = arith.cmpf oge, %193, %50 : vector<1x1xf32>
    %195 = arith.select %194, %187, %183 : vector<1x1xi1>, vector<1x1xi32>
    %c12_i32 = arith.constant 12 : i32
    %c30_i32_57 = arith.constant 30 : i32
    %196 = arith.subi %c30_i32_57, %c12_i32 : i32
    %c1_i32_58 = arith.constant 1 : i32
    %197 = arith.shli %c1_i32_58, %196 : i32
    %198 = vector.broadcast %197 : i32 to vector<1x1xi32>
    %199 = arith.ori %195, %198 : vector<1x1xi32>
    %200 = vector.broadcast %199 : vector<1x1xi32> to vector<1x128xi32>
    %201 = arith.cmpi sge, %46, %200 : vector<1x128xi32>
    %202 = arith.extui %201 : vector<1x128xi1> to vector<1x128xi32>
    %203 = arith.sitofp %202 : vector<1x128xi32> to vector<1x128xf32>
    %cst_59 = arith.constant dense<0.000000e+00> : vector<1xf32>
    %204 = vector.multi_reduction <add>, %203, %cst_59 [1] : vector<1x128xf32> to vector<1xf32>
    %205 = vector.shape_cast %204 : vector<1xf32> to vector<1x1xf32>
    %206 = arith.cmpf oge, %205, %50 : vector<1x1xf32>
    %207 = arith.select %206, %199, %195 : vector<1x1xi1>, vector<1x1xi32>
    %c13_i32 = arith.constant 13 : i32
    %c30_i32_60 = arith.constant 30 : i32
    %208 = arith.subi %c30_i32_60, %c13_i32 : i32
    %c1_i32_61 = arith.constant 1 : i32
    %209 = arith.shli %c1_i32_61, %208 : i32
    %210 = vector.broadcast %209 : i32 to vector<1x1xi32>
    %211 = arith.ori %207, %210 : vector<1x1xi32>
    %212 = vector.broadcast %211 : vector<1x1xi32> to vector<1x128xi32>
    %213 = arith.cmpi sge, %46, %212 : vector<1x128xi32>
    %214 = arith.extui %213 : vector<1x128xi1> to vector<1x128xi32>
    %215 = arith.sitofp %214 : vector<1x128xi32> to vector<1x128xf32>
    %cst_62 = arith.constant dense<0.000000e+00> : vector<1xf32>
    %216 = vector.multi_reduction <add>, %215, %cst_62 [1] : vector<1x128xf32> to vector<1xf32>
    %217 = vector.shape_cast %216 : vector<1xf32> to vector<1x1xf32>
    %218 = arith.cmpf oge, %217, %50 : vector<1x1xf32>
    %219 = arith.select %218, %211, %207 : vector<1x1xi1>, vector<1x1xi32>
    %c14_i32 = arith.constant 14 : i32
    %c30_i32_63 = arith.constant 30 : i32
    %220 = arith.subi %c30_i32_63, %c14_i32 : i32
    %c1_i32_64 = arith.constant 1 : i32
    %221 = arith.shli %c1_i32_64, %220 : i32
    %222 = vector.broadcast %221 : i32 to vector<1x1xi32>
    %223 = arith.ori %219, %222 : vector<1x1xi32>
    %224 = vector.broadcast %223 : vector<1x1xi32> to vector<1x128xi32>
    %225 = arith.cmpi sge, %46, %224 : vector<1x128xi32>
    %226 = arith.extui %225 : vector<1x128xi1> to vector<1x128xi32>
    %227 = arith.sitofp %226 : vector<1x128xi32> to vector<1x128xf32>
    %cst_65 = arith.constant dense<0.000000e+00> : vector<1xf32>
    %228 = vector.multi_reduction <add>, %227, %cst_65 [1] : vector<1x128xf32> to vector<1xf32>
    %229 = vector.shape_cast %228 : vector<1xf32> to vector<1x1xf32>
    %230 = arith.cmpf oge, %229, %50 : vector<1x1xf32>
    %231 = arith.select %230, %223, %219 : vector<1x1xi1>, vector<1x1xi32>
    %c15_i32 = arith.constant 15 : i32
    %c30_i32_66 = arith.constant 30 : i32
    %232 = arith.subi %c30_i32_66, %c15_i32 : i32
    %c1_i32_67 = arith.constant 1 : i32
    %233 = arith.shli %c1_i32_67, %232 : i32
    %234 = vector.broadcast %233 : i32 to vector<1x1xi32>
    %235 = arith.ori %231, %234 : vector<1x1xi32>
    %236 = vector.broadcast %235 : vector<1x1xi32> to vector<1x128xi32>
    %237 = arith.cmpi sge, %46, %236 : vector<1x128xi32>
    %238 = arith.extui %237 : vector<1x128xi1> to vector<1x128xi32>
    %239 = arith.sitofp %238 : vector<1x128xi32> to vector<1x128xf32>
    %cst_68 = arith.constant dense<0.000000e+00> : vector<1xf32>
    %240 = vector.multi_reduction <add>, %239, %cst_68 [1] : vector<1x128xf32> to vector<1xf32>
    %241 = vector.shape_cast %240 : vector<1xf32> to vector<1x1xf32>
    %242 = arith.cmpf oge, %241, %50 : vector<1x1xf32>
    %243 = arith.select %242, %235, %231 : vector<1x1xi1>, vector<1x1xi32>
    %c16_i32 = arith.constant 16 : i32
    %c30_i32_69 = arith.constant 30 : i32
    %244 = arith.subi %c30_i32_69, %c16_i32 : i32
    %c1_i32_70 = arith.constant 1 : i32
    %245 = arith.shli %c1_i32_70, %244 : i32
    %246 = vector.broadcast %245 : i32 to vector<1x1xi32>
    %247 = arith.ori %243, %246 : vector<1x1xi32>
    %248 = vector.broadcast %247 : vector<1x1xi32> to vector<1x128xi32>
    %249 = arith.cmpi sge, %46, %248 : vector<1x128xi32>
    %250 = arith.extui %249 : vector<1x128xi1> to vector<1x128xi32>
    %251 = arith.sitofp %250 : vector<1x128xi32> to vector<1x128xf32>
    %cst_71 = arith.constant dense<0.000000e+00> : vector<1xf32>
    %252 = vector.multi_reduction <add>, %251, %cst_71 [1] : vector<1x128xf32> to vector<1xf32>
    %253 = vector.shape_cast %252 : vector<1xf32> to vector<1x1xf32>
    %254 = arith.cmpf oge, %253, %50 : vector<1x1xf32>
    %255 = arith.select %254, %247, %243 : vector<1x1xi1>, vector<1x1xi32>
    %c17_i32 = arith.constant 17 : i32
    %c30_i32_72 = arith.constant 30 : i32
    %256 = arith.subi %c30_i32_72, %c17_i32 : i32
    %c1_i32_73 = arith.constant 1 : i32
    %257 = arith.shli %c1_i32_73, %256 : i32
    %258 = vector.broadcast %257 : i32 to vector<1x1xi32>
    %259 = arith.ori %255, %258 : vector<1x1xi32>
    %260 = vector.broadcast %259 : vector<1x1xi32> to vector<1x128xi32>
    %261 = arith.cmpi sge, %46, %260 : vector<1x128xi32>
    %262 = arith.extui %261 : vector<1x128xi1> to vector<1x128xi32>
    %263 = arith.sitofp %262 : vector<1x128xi32> to vector<1x128xf32>
    %cst_74 = arith.constant dense<0.000000e+00> : vector<1xf32>
    %264 = vector.multi_reduction <add>, %263, %cst_74 [1] : vector<1x128xf32> to vector<1xf32>
    %265 = vector.shape_cast %264 : vector<1xf32> to vector<1x1xf32>
    %266 = arith.cmpf oge, %265, %50 : vector<1x1xf32>
    %267 = arith.select %266, %259, %255 : vector<1x1xi1>, vector<1x1xi32>
    %c18_i32 = arith.constant 18 : i32
    %c30_i32_75 = arith.constant 30 : i32
    %268 = arith.subi %c30_i32_75, %c18_i32 : i32
    %c1_i32_76 = arith.constant 1 : i32
    %269 = arith.shli %c1_i32_76, %268 : i32
    %270 = vector.broadcast %269 : i32 to vector<1x1xi32>
    %271 = arith.ori %267, %270 : vector<1x1xi32>
    %272 = vector.broadcast %271 : vector<1x1xi32> to vector<1x128xi32>
    %273 = arith.cmpi sge, %46, %272 : vector<1x128xi32>
    %274 = arith.extui %273 : vector<1x128xi1> to vector<1x128xi32>
    %275 = arith.sitofp %274 : vector<1x128xi32> to vector<1x128xf32>
    %cst_77 = arith.constant dense<0.000000e+00> : vector<1xf32>
    %276 = vector.multi_reduction <add>, %275, %cst_77 [1] : vector<1x128xf32> to vector<1xf32>
    %277 = vector.shape_cast %276 : vector<1xf32> to vector<1x1xf32>
    %278 = arith.cmpf oge, %277, %50 : vector<1x1xf32>
    %279 = arith.select %278, %271, %267 : vector<1x1xi1>, vector<1x1xi32>
    %c19_i32 = arith.constant 19 : i32
    %c30_i32_78 = arith.constant 30 : i32
    %280 = arith.subi %c30_i32_78, %c19_i32 : i32
    %c1_i32_79 = arith.constant 1 : i32
    %281 = arith.shli %c1_i32_79, %280 : i32
    %282 = vector.broadcast %281 : i32 to vector<1x1xi32>
    %283 = arith.ori %279, %282 : vector<1x1xi32>
    %284 = vector.broadcast %283 : vector<1x1xi32> to vector<1x128xi32>
    %285 = arith.cmpi sge, %46, %284 : vector<1x128xi32>
    %286 = arith.extui %285 : vector<1x128xi1> to vector<1x128xi32>
    %287 = arith.sitofp %286 : vector<1x128xi32> to vector<1x128xf32>
    %cst_80 = arith.constant dense<0.000000e+00> : vector<1xf32>
    %288 = vector.multi_reduction <add>, %287, %cst_80 [1] : vector<1x128xf32> to vector<1xf32>
    %289 = vector.shape_cast %288 : vector<1xf32> to vector<1x1xf32>
    %290 = arith.cmpf oge, %289, %50 : vector<1x1xf32>
    %291 = arith.select %290, %283, %279 : vector<1x1xi1>, vector<1x1xi32>
    %c20_i32 = arith.constant 20 : i32
    %c30_i32_81 = arith.constant 30 : i32
    %292 = arith.subi %c30_i32_81, %c20_i32 : i32
    %c1_i32_82 = arith.constant 1 : i32
    %293 = arith.shli %c1_i32_82, %292 : i32
    %294 = vector.broadcast %293 : i32 to vector<1x1xi32>
    %295 = arith.ori %291, %294 : vector<1x1xi32>
    %296 = vector.broadcast %295 : vector<1x1xi32> to vector<1x128xi32>
    %297 = arith.cmpi sge, %46, %296 : vector<1x128xi32>
    %298 = arith.extui %297 : vector<1x128xi1> to vector<1x128xi32>
    %299 = arith.sitofp %298 : vector<1x128xi32> to vector<1x128xf32>
    %cst_83 = arith.constant dense<0.000000e+00> : vector<1xf32>
    %300 = vector.multi_reduction <add>, %299, %cst_83 [1] : vector<1x128xf32> to vector<1xf32>
    %301 = vector.shape_cast %300 : vector<1xf32> to vector<1x1xf32>
    %302 = arith.cmpf oge, %301, %50 : vector<1x1xf32>
    %303 = arith.select %302, %295, %291 : vector<1x1xi1>, vector<1x1xi32>
    %c21_i32 = arith.constant 21 : i32
    %c30_i32_84 = arith.constant 30 : i32
    %304 = arith.subi %c30_i32_84, %c21_i32 : i32
    %c1_i32_85 = arith.constant 1 : i32
    %305 = arith.shli %c1_i32_85, %304 : i32
    %306 = vector.broadcast %305 : i32 to vector<1x1xi32>
    %307 = arith.ori %303, %306 : vector<1x1xi32>
    %308 = vector.broadcast %307 : vector<1x1xi32> to vector<1x128xi32>
    %309 = arith.cmpi sge, %46, %308 : vector<1x128xi32>
    %310 = arith.extui %309 : vector<1x128xi1> to vector<1x128xi32>
    %311 = arith.sitofp %310 : vector<1x128xi32> to vector<1x128xf32>
    %cst_86 = arith.constant dense<0.000000e+00> : vector<1xf32>
    %312 = vector.multi_reduction <add>, %311, %cst_86 [1] : vector<1x128xf32> to vector<1xf32>
    %313 = vector.shape_cast %312 : vector<1xf32> to vector<1x1xf32>
    %314 = arith.cmpf oge, %313, %50 : vector<1x1xf32>
    %315 = arith.select %314, %307, %303 : vector<1x1xi1>, vector<1x1xi32>
    %c22_i32 = arith.constant 22 : i32
    %c30_i32_87 = arith.constant 30 : i32
    %316 = arith.subi %c30_i32_87, %c22_i32 : i32
    %c1_i32_88 = arith.constant 1 : i32
    %317 = arith.shli %c1_i32_88, %316 : i32
    %318 = vector.broadcast %317 : i32 to vector<1x1xi32>
    %319 = arith.ori %315, %318 : vector<1x1xi32>
    %320 = vector.broadcast %319 : vector<1x1xi32> to vector<1x128xi32>
    %321 = arith.cmpi sge, %46, %320 : vector<1x128xi32>
    %322 = arith.extui %321 : vector<1x128xi1> to vector<1x128xi32>
    %323 = arith.sitofp %322 : vector<1x128xi32> to vector<1x128xf32>
    %cst_89 = arith.constant dense<0.000000e+00> : vector<1xf32>
    %324 = vector.multi_reduction <add>, %323, %cst_89 [1] : vector<1x128xf32> to vector<1xf32>
    %325 = vector.shape_cast %324 : vector<1xf32> to vector<1x1xf32>
    %326 = arith.cmpf oge, %325, %50 : vector<1x1xf32>
    %327 = arith.select %326, %319, %315 : vector<1x1xi1>, vector<1x1xi32>
    %c23_i32 = arith.constant 23 : i32
    %c30_i32_90 = arith.constant 30 : i32
    %328 = arith.subi %c30_i32_90, %c23_i32 : i32
    %c1_i32_91 = arith.constant 1 : i32
    %329 = arith.shli %c1_i32_91, %328 : i32
    %330 = vector.broadcast %329 : i32 to vector<1x1xi32>
    %331 = arith.ori %327, %330 : vector<1x1xi32>
    %332 = vector.broadcast %331 : vector<1x1xi32> to vector<1x128xi32>
    %333 = arith.cmpi sge, %46, %332 : vector<1x128xi32>
    %334 = arith.extui %333 : vector<1x128xi1> to vector<1x128xi32>
    %335 = arith.sitofp %334 : vector<1x128xi32> to vector<1x128xf32>
    %cst_92 = arith.constant dense<0.000000e+00> : vector<1xf32>
    %336 = vector.multi_reduction <add>, %335, %cst_92 [1] : vector<1x128xf32> to vector<1xf32>
    %337 = vector.shape_cast %336 : vector<1xf32> to vector<1x1xf32>
    %338 = arith.cmpf oge, %337, %50 : vector<1x1xf32>
    %339 = arith.select %338, %331, %327 : vector<1x1xi1>, vector<1x1xi32>
    %c24_i32 = arith.constant 24 : i32
    %c30_i32_93 = arith.constant 30 : i32
    %340 = arith.subi %c30_i32_93, %c24_i32 : i32
    %c1_i32_94 = arith.constant 1 : i32
    %341 = arith.shli %c1_i32_94, %340 : i32
    %342 = vector.broadcast %341 : i32 to vector<1x1xi32>
    %343 = arith.ori %339, %342 : vector<1x1xi32>
    %344 = vector.broadcast %343 : vector<1x1xi32> to vector<1x128xi32>
    %345 = arith.cmpi sge, %46, %344 : vector<1x128xi32>
    %346 = arith.extui %345 : vector<1x128xi1> to vector<1x128xi32>
    %347 = arith.sitofp %346 : vector<1x128xi32> to vector<1x128xf32>
    %cst_95 = arith.constant dense<0.000000e+00> : vector<1xf32>
    %348 = vector.multi_reduction <add>, %347, %cst_95 [1] : vector<1x128xf32> to vector<1xf32>
    %349 = vector.shape_cast %348 : vector<1xf32> to vector<1x1xf32>
    %350 = arith.cmpf oge, %349, %50 : vector<1x1xf32>
    %351 = arith.select %350, %343, %339 : vector<1x1xi1>, vector<1x1xi32>
    %c25_i32 = arith.constant 25 : i32
    %c30_i32_96 = arith.constant 30 : i32
    %352 = arith.subi %c30_i32_96, %c25_i32 : i32
    %c1_i32_97 = arith.constant 1 : i32
    %353 = arith.shli %c1_i32_97, %352 : i32
    %354 = vector.broadcast %353 : i32 to vector<1x1xi32>
    %355 = arith.ori %351, %354 : vector<1x1xi32>
    %356 = vector.broadcast %355 : vector<1x1xi32> to vector<1x128xi32>
    %357 = arith.cmpi sge, %46, %356 : vector<1x128xi32>
    %358 = arith.extui %357 : vector<1x128xi1> to vector<1x128xi32>
    %359 = arith.sitofp %358 : vector<1x128xi32> to vector<1x128xf32>
    %cst_98 = arith.constant dense<0.000000e+00> : vector<1xf32>
    %360 = vector.multi_reduction <add>, %359, %cst_98 [1] : vector<1x128xf32> to vector<1xf32>
    %361 = vector.shape_cast %360 : vector<1xf32> to vector<1x1xf32>
    %362 = arith.cmpf oge, %361, %50 : vector<1x1xf32>
    %363 = arith.select %362, %355, %351 : vector<1x1xi1>, vector<1x1xi32>
    %c26_i32 = arith.constant 26 : i32
    %c30_i32_99 = arith.constant 30 : i32
    %364 = arith.subi %c30_i32_99, %c26_i32 : i32
    %c1_i32_100 = arith.constant 1 : i32
    %365 = arith.shli %c1_i32_100, %364 : i32
    %366 = vector.broadcast %365 : i32 to vector<1x1xi32>
    %367 = arith.ori %363, %366 : vector<1x1xi32>
    %368 = vector.broadcast %367 : vector<1x1xi32> to vector<1x128xi32>
    %369 = arith.cmpi sge, %46, %368 : vector<1x128xi32>
    %370 = arith.extui %369 : vector<1x128xi1> to vector<1x128xi32>
    %371 = arith.sitofp %370 : vector<1x128xi32> to vector<1x128xf32>
    %cst_101 = arith.constant dense<0.000000e+00> : vector<1xf32>
    %372 = vector.multi_reduction <add>, %371, %cst_101 [1] : vector<1x128xf32> to vector<1xf32>
    %373 = vector.shape_cast %372 : vector<1xf32> to vector<1x1xf32>
    %374 = arith.cmpf oge, %373, %50 : vector<1x1xf32>
    %375 = arith.select %374, %367, %363 : vector<1x1xi1>, vector<1x1xi32>
    %c27_i32 = arith.constant 27 : i32
    %c30_i32_102 = arith.constant 30 : i32
    %376 = arith.subi %c30_i32_102, %c27_i32 : i32
    %c1_i32_103 = arith.constant 1 : i32
    %377 = arith.shli %c1_i32_103, %376 : i32
    %378 = vector.broadcast %377 : i32 to vector<1x1xi32>
    %379 = arith.ori %375, %378 : vector<1x1xi32>
    %380 = vector.broadcast %379 : vector<1x1xi32> to vector<1x128xi32>
    %381 = arith.cmpi sge, %46, %380 : vector<1x128xi32>
    %382 = arith.extui %381 : vector<1x128xi1> to vector<1x128xi32>
    %383 = arith.sitofp %382 : vector<1x128xi32> to vector<1x128xf32>
    %cst_104 = arith.constant dense<0.000000e+00> : vector<1xf32>
    %384 = vector.multi_reduction <add>, %383, %cst_104 [1] : vector<1x128xf32> to vector<1xf32>
    %385 = vector.shape_cast %384 : vector<1xf32> to vector<1x1xf32>
    %386 = arith.cmpf oge, %385, %50 : vector<1x1xf32>
    %387 = arith.select %386, %379, %375 : vector<1x1xi1>, vector<1x1xi32>
    %c28_i32 = arith.constant 28 : i32
    %c30_i32_105 = arith.constant 30 : i32
    %388 = arith.subi %c30_i32_105, %c28_i32 : i32
    %c1_i32_106 = arith.constant 1 : i32
    %389 = arith.shli %c1_i32_106, %388 : i32
    %390 = vector.broadcast %389 : i32 to vector<1x1xi32>
    %391 = arith.ori %387, %390 : vector<1x1xi32>
    %392 = vector.broadcast %391 : vector<1x1xi32> to vector<1x128xi32>
    %393 = arith.cmpi sge, %46, %392 : vector<1x128xi32>
    %394 = arith.extui %393 : vector<1x128xi1> to vector<1x128xi32>
    %395 = arith.sitofp %394 : vector<1x128xi32> to vector<1x128xf32>
    %cst_107 = arith.constant dense<0.000000e+00> : vector<1xf32>
    %396 = vector.multi_reduction <add>, %395, %cst_107 [1] : vector<1x128xf32> to vector<1xf32>
    %397 = vector.shape_cast %396 : vector<1xf32> to vector<1x1xf32>
    %398 = arith.cmpf oge, %397, %50 : vector<1x1xf32>
    %399 = arith.select %398, %391, %387 : vector<1x1xi1>, vector<1x1xi32>
    %c29_i32 = arith.constant 29 : i32
    %c30_i32_108 = arith.constant 30 : i32
    %400 = arith.subi %c30_i32_108, %c29_i32 : i32
    %c1_i32_109 = arith.constant 1 : i32
    %401 = arith.shli %c1_i32_109, %400 : i32
    %402 = vector.broadcast %401 : i32 to vector<1x1xi32>
    %403 = arith.ori %399, %402 : vector<1x1xi32>
    %404 = vector.broadcast %403 : vector<1x1xi32> to vector<1x128xi32>
    %405 = arith.cmpi sge, %46, %404 : vector<1x128xi32>
    %406 = arith.extui %405 : vector<1x128xi1> to vector<1x128xi32>
    %407 = arith.sitofp %406 : vector<1x128xi32> to vector<1x128xf32>
    %cst_110 = arith.constant dense<0.000000e+00> : vector<1xf32>
    %408 = vector.multi_reduction <add>, %407, %cst_110 [1] : vector<1x128xf32> to vector<1xf32>
    %409 = vector.shape_cast %408 : vector<1xf32> to vector<1x1xf32>
    %410 = arith.cmpf oge, %409, %50 : vector<1x1xf32>
    %411 = arith.select %410, %403, %399 : vector<1x1xi1>, vector<1x1xi32>
    %c30_i32_111 = arith.constant 30 : i32
    %c30_i32_112 = arith.constant 30 : i32
    %412 = arith.subi %c30_i32_112, %c30_i32_111 : i32
    %c1_i32_113 = arith.constant 1 : i32
    %413 = arith.shli %c1_i32_113, %412 : i32
    %414 = vector.broadcast %413 : i32 to vector<1x1xi32>
    %415 = arith.ori %411, %414 : vector<1x1xi32>
    %416 = vector.broadcast %415 : vector<1x1xi32> to vector<1x128xi32>
    %417 = arith.cmpi sge, %46, %416 : vector<1x128xi32>
    %418 = arith.extui %417 : vector<1x128xi1> to vector<1x128xi32>
    %419 = arith.sitofp %418 : vector<1x128xi32> to vector<1x128xf32>
    %cst_114 = arith.constant dense<0.000000e+00> : vector<1xf32>
    %420 = vector.multi_reduction <add>, %419, %cst_114 [1] : vector<1x128xf32> to vector<1xf32>
    %421 = vector.shape_cast %420 : vector<1xf32> to vector<1x1xf32>
    %422 = arith.cmpf oge, %421, %50 : vector<1x1xf32>
    %423 = arith.select %422, %415, %411 : vector<1x1xi1>, vector<1x1xi32>
    %c31_i32 = arith.constant 31 : i32
    %424 = vector.broadcast %423 : vector<1x1xi32> to vector<1x128xi32>
    %425 = arith.cmpi sge, %46, %424 : vector<1x128xi32>
    %426 = arith.ori %5, %425 : vector<1x128xi1>
    %cst_115 = arith.constant 0.000000e+00 : f32
    %427 = vector.broadcast %cst_115 : f32 to vector<1x128xf32>
    %428 = arith.select %426, %43, %427 : vector<1x128xi1>, vector<1x128xf32>
    %429 = vector.shape_cast %428 : vector<1x128xf32> to vector<1x1x128xf32>
    %cst_116 = arith.constant dense<0.000000e+00> : vector<1xf32>
    %430 = vector.multi_reduction <add>, %429, %cst_116 [1, 2] : vector<1x1x128xf32> to vector<1xf32>
    %431 = vector.shape_cast %430 : vector<1xf32> to vector<1x1x1xf32>
    %432 = vector.extract %431[0, 0, 0] : f32 from vector<1x1x1xf32>
    %433 = vector.shape_cast %9 : vector<1x1xf32> to vector<1x1x1xf32>
    %cst_117 = arith.constant dense<0.000000e+00> : vector<1xf32>
    %434 = vector.multi_reduction <add>, %433, %cst_117 [1, 2] : vector<1x1x1xf32> to vector<1xf32>
    %435 = vector.shape_cast %434 : vector<1xf32> to vector<1x1x1xf32>
    %436 = vector.extract %435[0, 0, 0] : f32 from vector<1x1x1xf32>
    %437 = tpu.iota {dimensions = array<i32: 1>} : vector<1x8x128xi32>
    %c0_i32_118 = arith.constant 0 : i32
    %438 = vector.broadcast %c0_i32_118 : i32 to vector<1x8x128xi32>
    %439 = arith.cmpi eq, %437, %438 : vector<1x8x128xi32>
    %c1_i32_119 = arith.constant 1 : i32
    %440 = vector.broadcast %c1_i32_119 : i32 to vector<1x8x128xi32>
    %441 = arith.cmpi eq, %437, %440 : vector<1x8x128xi32>
    %c2_i32_120 = arith.constant 2 : i32
    %442 = vector.broadcast %c2_i32_120 : i32 to vector<1x8x128xi32>
    %443 = arith.cmpi eq, %437, %442 : vector<1x8x128xi32>
    %cst_121 = arith.constant 0.000000e+00 : f32
    %444 = vector.broadcast %436 : f32 to vector<1x8x128xf32>
    %445 = vector.broadcast %cst_121 : f32 to vector<1x8x128xf32>
    %446 = arith.select %443, %444, %445 : vector<1x8x128xi1>, vector<1x8x128xf32>
    %447 = vector.broadcast %432 : f32 to vector<1x8x128xf32>
    %448 = arith.select %441, %447, %446 : vector<1x8x128xi1>, vector<1x8x128xf32>
    %449 = vector.broadcast %27 : f32 to vector<1x8x128xf32>
    %450 = arith.select %439, %449, %448 : vector<1x8x128xi1>, vector<1x8x128xf32>
    %c0_122 = arith.constant 0 : index
    %c0_123 = arith.constant 0 : index
    %c0_124 = arith.constant 0 : index
    %451 = vector.load %arg4[%c0_122, %c0_123, %c0_124] : memref<1x8x128xf32, #tpu.memory_space<vmem>>, vector<1x8x128xf32>
    tpu.vector_store %arg4[%c0_122, %c0_123, %c0_124], %450 {strides = array<i32>} : memref<1x8x128xf32, #tpu.memory_space<vmem>>, vector<1x8x128xf32>,
    return
  }
  func.func @transform_0(%arg0: i32) -> (i32, i32, i32) {
    %c0_i32 = arith.constant 0 : i32
    %c0_i32_0 = arith.constant 0 : i32
    %c0_i32_1 = arith.constant 0 : i32
    return %arg0, %c0_i32, %c0_i32_0 : i32, i32, i32
  }
  func.func @transform_1(%arg0: i32) -> (i32, i32, i32) {
    %c0_i32 = arith.constant 0 : i32
    %c0_i32_0 = arith.constant 0 : i32
    %c0_i32_1 = arith.constant 0 : i32
    return %arg0, %c0_i32, %c0_i32_0 : i32, i32, i32
  }
  func.func @transform_2(%arg0: i32) -> (i32, i32, i32) {
    %c0_i32 = arith.constant 0 : i32
    %c0_i32_0 = arith.constant 0 : i32
    %c0_i32_1 = arith.constant 0 : i32
    return %arg0, %c0_i32, %c0_i32_0 : i32, i32, i32
  }
  func.func @transform_3(%arg0: i32) -> (i32, i32, i32) {
    %c0_i32 = arith.constant 0 : i32
    %c0_i32_0 = arith.constant 0 : i32
    %c0_i32_1 = arith.constant 0 : i32
    return %arg0, %c0_i32, %c0_i32_0 : i32, i32, i32
  }
}

</mosaic_0001>

<llo_original>
// kernel: tpu_custom_call.1
$region0: #{tpu_custom_call.1}
  #allocation0 [shape = 'u32[]', space=smem, size = 0x4, offset = 0x4, fixed_abs, tag = 'smem constant byte address 0x4 - core index']
  #allocation1 [shape = 'u32[144,128]{1,0:T(1,128)}', space=vmem, size = 0x12000, scoped, tag = 'internal scratch']
  %s0 = inlined_call_operand.hbm [shape: f32[2,8,128], index: 0, kind: input, shape index: {}]
  %s1 = inlined_call_operand.hbm [shape: f32[2,8,128], index: 1, kind: input, shape index: {}]
  %s2 = inlined_call_operand.vmem [shape: s32[2,1,128], index: 2, kind: input, shape index: {}]
  %s3 = inlined_call_operand.hbm [shape: f32[2,8,128], index: 3, kind: output, shape index: {}]
  %s4 = sld [smem:[#allocation0]]
  $region53: #{tpu_custom_call.1} parent=0
    _
  %s6 = ssub.s32 1, %s4
  %s7 = scalar_select 0, %s6, %s4
  $region1: #{tpu_custom_call.1} parent=0
    #allocation2 [shape = 'u8[8192]{0}', space=vmem, size = 0x2000, scoped, tag = 'input window, operand 0']
    #allocation3 [shape = 's32[2]{0}', space=sflag, size = 0x8, scoped, tag = 'scoped memory for tpu_custom_call.1']
    #allocation4 [shape = 's32[2]{0}', space=sflag, size = 0x8, scoped, tag = 'scoped memory for tpu_custom_call.1']
    #allocation5 [shape = 'u8[8192]{0}', space=vmem, size = 0x2000, scoped, tag = 'input window, operand 1']
    #allocation6 [shape = 's32[2]{0}', space=sflag, size = 0x8, scoped, tag = 'scoped memory for tpu_custom_call.1']
    #allocation7 [shape = 'u8[8192]{0}', space=vmem, size = 0x2000, scoped, tag = 'output window, operand 0']
    %8 = vsyncpa [#allocation3], 0
    %s9 = scalar_lea.sflag [#allocation3], 1
    %10 = vsyncpa %s9, 0
    %11 = vsyncpa [#allocation6], 0
    %s12 = scalar_lea.sflag [#allocation6], 1
    %13 = vsyncpa %s12, 0
    %14 = vsyncpa [#allocation4], 0
    %s15 = scalar_lea.sflag [#allocation4], 1
    %16 = vsyncpa %s15, 0
    loop: start=0, step=1, limit=4
    $region2: #{tpu_custom_call.1} parent=1 // loop_pre_header
      _
    $region3: #{tpu_custom_call.1} parent=1 // loop_header
      %s18 = sphi 0, %s22
      %p19 = scmp.ge.s32.totalorder %s18, 4
      %s28 = sphi 0, %s30
      %s31 = sphi 0, %s28
      %s32 = sphi 0, %s31
      %s48 = sphi 0, %s32
      %s54 = sphi 0, %s56
      %s57 = sphi 0, %s54
      %s58 = sphi 0, %s57
      %s74 = sphi 0, %s58
      %s80 = sphi 0, %s82
      %s83 = sphi 0, %s80
      %s84 = sphi 0, %s83
      %s100 = sphi 0, %s84
      %s106 = sphi 0, %s108
      %s109 = sphi 0, %s106
      %s110 = sphi 0, %s109
      %s126 = sphi 0, %s110
    $region4: #{tpu_custom_call.1} parent=1 // loop_header_branch
      %21 = sbr.rel (%p19) target = $region8
    $region5: #{tpu_custom_call.1} parent=1 // loop_body
      %s23 = ssub.s32 %s18, 1
      %s24 = ssub.s32 %s18, 2
      %s25 = sadd.s32 %s18, 1
      %s26 = ssub.s32 %s18, %s25
      %p27 = scmp.eq.s32.totalorder %s26, 0
      %s29 = sadd.s32 %s28, 1
      %s30 = scalar_select %p27, %s28, %s29
      %p33 = pneg %p27
      %p34 = scmp.eq.s32.totalorder %s18, 1
      %p35 = por %p33, %p34
      %p36 = scmp.ne.s32.totalorder %s28, %s31
      %p37 = scmp.eq.s32.totalorder %s18, 0
      %p38 = por %p36, %p37
      %p39 = scmp.ne.s32.totalorder %s28, %s31
      %p40 = scmp.eq.s32.totalorder %s23, 1
      %p41 = por %p39, %p40
      %p42 = scmp.ne.s32.totalorder %s31, %s32
      %p43 = scmp.eq.s32.totalorder %s23, 0
      %p44 = por %p42, %p43
      %p45 = scmp.ne.s32.totalorder %s31, %s32
      %p46 = scmp.eq.s32.totalorder %s24, 1
      %p47 = por %p45, %p46
      %p49 = scmp.ne.s32.totalorder %s32, %s48
      %p50 = scmp.eq.s32.totalorder %s24, 0
      %p51 = por %p49, %p50
      %s52 = ssub.s32 %s18, %s25
      %p53 = scmp.eq.s32.totalorder %s52, 0
      %s55 = sadd.s32 %s54, 1
      %s56 = scalar_select %p53, %s54, %s55
      %p59 = pneg %p53
      %p60 = scmp.eq.s32.totalorder %s18, 1
      %p61 = por %p59, %p60
      %p62 = scmp.ne.s32.totalorder %s54, %s57
      %p63 = scmp.eq.s32.totalorder %s18, 0
      %p64 = por %p62, %p63
      %p65 = scmp.ne.s32.totalorder %s54, %s57
      %p66 = scmp.eq.s32.totalorder %s23, 1
      %p67 = por %p65, %p66
      %p68 = scmp.ne.s32.totalorder %s57, %s58
      %p69 = scmp.eq.s32.totalorder %s23, 0
      %p70 = por %p68, %p69
      %p71 = scmp.ne.s32.totalorder %s57, %s58
      %p72 = scmp.eq.s32.totalorder %s24, 1
      %p73 = por %p71, %p72
      %p75 = scmp.ne.s32.totalorder %s58, %s74
      %p76 = scmp.eq.s32.totalorder %s24, 0
      %p77 = por %p75, %p76
      %s78 = ssub.s32 %s18, %s25
      %p79 = scmp.eq.s32.totalorder %s78, 0
      %s81 = sadd.s32 %s80, 1
      %s82 = scalar_select %p79, %s80, %s81
      %p85 = pneg %p79
      %p86 = scmp.eq.s32.totalorder %s18, 1
      %p87 = por %p85, %p86
      %p88 = scmp.ne.s32.totalorder %s80, %s83
      %p89 = scmp.eq.s32.totalorder %s18, 0
      %p90 = por %p88, %p89
      %p91 = scmp.ne.s32.totalorder %s80, %s83
      %p92 = scmp.eq.s32.totalorder %s23, 1
      %p93 = por %p91, %p92
      %p94 = scmp.ne.s32.totalorder %s83, %s84
      %p95 = scmp.eq.s32.totalorder %s23, 0
      %p96 = por %p94, %p95
      %p97 = scmp.ne.s32.totalorder %s83, %s84
      %p98 = scmp.eq.s32.totalorder %s24, 1
      %p99 = por %p97, %p98
      %p101 = scmp.ne.s32.totalorder %s84, %s100
      %p102 = scmp.eq.s32.totalorder %s24, 0
      %p103 = por %p101, %p102
      %s104 = ssub.s32 %s18, %s25
      %p105 = scmp.eq.s32.totalorder %s104, 0
      %s107 = sadd.s32 %s106, 1
      %s108 = scalar_select %p105, %s106, %s107
      %p111 = pneg %p105
      %p112 = scmp.eq.s32.totalorder %s18, 1
      %p113 = por %p111, %p112
      %p114 = scmp.ne.s32.totalorder %s106, %s109
      %p115 = scmp.eq.s32.totalorder %s18, 0
      %p116 = por %p114, %p115
      %p117 = scmp.ne.s32.totalorder %s106, %s109
      %p118 = scmp.eq.s32.totalorder %s23, 1
      %p119 = por %p117, %p118
      %p120 = scmp.ne.s32.totalorder %s109, %s110
      %p121 = scmp.eq.s32.totalorder %s23, 0
      %p122 = por %p120, %p121
      %p123 = scmp.ne.s32.totalorder %s109, %s110
      %p124 = scmp.eq.s32.totalorder %s24, 1
      %p125 = por %p123, %p124
      %p127 = scmp.ne.s32.totalorder %s110, %s126
      %p128 = scmp.eq.s32.totalorder %s24, 0
      %p129 = por %p127, %p128
      %p130 = scmp.le.s32.totalorder 1, %s18
      %p131 = scmp.lt.s32.totalorder %s18, 3
      %p132 = pnand %p130, %p131
      %p133 = pneg %p132
      // Predicated region
      $region9: #{tpu_custom_call.1} parent=5 // pred_check
        _
      $region10: #{tpu_custom_call.1} parent=5 // pred_check_branch
        %135 = sbr.rel (%p132) target = $region12
      $region11: #{tpu_custom_call.1} parent=5 // pred_region
        %s136 = ssub.s32 %s18, 1
      $region12: #{tpu_custom_call.1} parent=5 // pred_fallthru
        _
      %p137 = scmp.lt.s32.totalorder %s18, 2
      // Predicated region
      $region13: #{tpu_custom_call.1} parent=5 // pred_check
        %p138 = pneg %p137
      $region14: #{tpu_custom_call.1} parent=5 // pred_check_branch
        %140 = sbr.rel (%p138) target = $region16
      $region15: #{tpu_custom_call.1} parent=5 // pred_region
        // Predicated region
        $region17: #{tpu_custom_call.1} parent=15 // pred_check
          %p141 = pneg %p38
        $region18: #{tpu_custom_call.1} parent=15 // pred_check_branch
          %143 = sbr.rel (%p141) target = $region20
        $region19: #{tpu_custom_call.1} parent=15 // pred_region
          %s144 = sand.u32 %s28, 1
          %s145 = scalar_lea.sflag [#allocation3], %s144
          %s146 = sand.u32 %s28, 1
          %s147 = smul.addr %s146, 8
          %s148 = scalar_lea.vmem [#allocation2], %s147
          %s150 = ssub.s32 128, 128
          %151 = vsyncadd %s145, %s150
          %s152 = smul.addr %s18, 128
          %s153 = scalar_lea.hbm %s0, %s152
          %s155 = sshll.u32 %s148, 4
          %s156 = int_to_ptr.vmem [resolvable:$true] %s155
          %158 = dma.hbm_to_vmem [thread:$0]  %s153, 128, %s156, %s145
        $region20: #{tpu_custom_call.1} parent=15 // pred_fallthru
          _
        // Predicated region
        $region21: #{tpu_custom_call.1} parent=15 // pred_check
          %p159 = pneg %p64
        $region22: #{tpu_custom_call.1} parent=15 // pred_check_branch
          %161 = sbr.rel (%p159) target = $region24
        $region23: #{tpu_custom_call.1} parent=15 // pred_region
          %s162 = sand.u32 %s54, 1
          %s163 = scalar_lea.sflag [#allocation6], %s162
          %s164 = sand.u32 %s54, 1
          %s165 = smul.addr %s164, 8
          %s166 = scalar_lea.vmem [#allocation5], %s165
          %s168 = ssub.s32 128, 128
          %169 = vsyncadd %s163, %s168
          %s170 = smul.addr %s18, 128
          %s171 = scalar_lea.hbm %s1, %s170
          %s173 = sshll.u32 %s166, 4
          %s174 = int_to_ptr.vmem [resolvable:$true] %s173
          %176 = dma.hbm_to_vmem [thread:$0]  %s171, 128, %s174, %s163
        $region24: #{tpu_custom_call.1} parent=15 // pred_fallthru
          _
        // Predicated region
        $region25: #{tpu_custom_call.1} parent=15 // pred_check
          %p177 = pneg %p90
        $region26: #{tpu_custom_call.1} parent=15 // pred_check_branch
          %179 = sbr.rel (%p177) target = $region28
        $region27: #{tpu_custom_call.1} parent=15 // pred_region
          %p180 = scmp.lt.s32.totalorder %s18, 1
          %s181 = scalar_select %p180, %s18, 1
          %s182 = scalar_lea.vmem %s2, %s181
        $region28: #{tpu_custom_call.1} parent=15 // pred_fallthru
          _
      $region16: #{tpu_custom_call.1} parent=5 // pred_fallthru
        _
      %p183 = scmp.le.s32.totalorder 1, %s18
      %p184 = scmp.lt.s32.totalorder %s18, 3
      %p185 = pnand %p183, %p184
      %p186 = pneg %p185
      // Predicated region
      $region29: #{tpu_custom_call.1} parent=5 // pred_check
        _
      $region30: #{tpu_custom_call.1} parent=5 // pred_check_branch
        %188 = sbr.rel (%p185) target = $region32
      $region31: #{tpu_custom_call.1} parent=5 // pred_region
        %s189 = ssub.s32 %s18, 1
        %s190 = sand.u32 %s31, 1
        %s191 = scalar_lea.sflag [#allocation3], %s190
        %s192 = sand.u32 %s31, 1
        %s193 = smul.addr %s192, 8
        %s194 = scalar_lea.vmem [#allocation2], %s193
        // Predicated region
        $region33: #{tpu_custom_call.1} parent=31 // pred_check
          %p195 = pneg %p44
        $region34: #{tpu_custom_call.1} parent=31 // pred_check_branch
          %197 = sbr.rel (%p195) target = $region36
        $region35: #{tpu_custom_call.1} parent=31 // pred_region
          %198 = dma.done %s191, 128
        $region36: #{tpu_custom_call.1} parent=31 // pred_fallthru
          _
        %s199 = sand.u32 %s57, 1
        %s200 = scalar_lea.sflag [#allocation6], %s199
        %s201 = sand.u32 %s57, 1
        %s202 = smul.addr %s201, 8
        %s203 = scalar_lea.vmem [#allocation5], %s202
        // Predicated region
        $region37: #{tpu_custom_call.1} parent=31 // pred_check
          %p204 = pneg %p70
        $region38: #{tpu_custom_call.1} parent=31 // pred_check_branch
          %206 = sbr.rel (%p204) target = $region40
        $region39: #{tpu_custom_call.1} parent=31 // pred_region
          %207 = dma.done %s200, 128
        $region40: #{tpu_custom_call.1} parent=31 // pred_fallthru
          _
        %s208 = sand.u32 %s31, 1
        %s209 = scalar_lea.sflag [#allocation3], %s208
        %s210 = sand.u32 %s31, 1
        %s211 = smul.addr %s210, 8
        %s212 = scalar_lea.vmem [#allocation2], %s211
        %p213 = pneg %p44
        %p214 = pneg %p41
        %s215 = sand.u32 %s57, 1
        %s216 = scalar_lea.sflag [#allocation6], %s215
        %s217 = sand.u32 %s57, 1
        %s218 = smul.addr %s217, 8
        %s219 = scalar_lea.vmem [#allocation5], %s218
        %p220 = pneg %p70
        %p221 = pneg %p67
        %p222 = scmp.lt.s32.totalorder %s23, 1
        %s223 = scalar_select %p222, %s23, 1
        %s224 = scalar_lea.vmem %s2, %s223
        %p225 = pneg %p96
        %p226 = pneg %p93
        %p227 = pneg %p122
        %p228 = pneg %p119
        %s229 = sand.u32 %s109, 1
        %s230 = scalar_lea.sflag [#allocation4], %s229
        %s231 = sand.u32 %s109, 1
        %s232 = smul.addr %s231, 8
        %s233 = scalar_lea.vmem [#allocation7], %s232
        %p234 = scmp.lt.s32.totalorder %s23, 1
        %s235 = scalar_select %p234, %s23, 1
        %s236 = scalar_lea.vmem %s2, %s235
        %v237 = vld [vmem:[%s194] sm:$0xff]
        %v238 = vld [vmem:[%s203] sm:$0xff]
        %v239 = vld [vmem:[%s236] sm:$0x1]
        %vm240 = vcmp.gt.s32.totalorder %v239, 0
        %v241 = vsel %vm240, 1, 0
        %v242 = vcvt.s32.f32 %v241
        %vm243 = vcmask 1040384
        %v244 = vsel %vm243, %v242, 0.0
        %245 = vadd.xlane.f32.xlu0 %v244
        %v246 = vpop.xlane.xlu0 %245
        %v248 = vrot.slane %v237, 4
        %v250 = vsub.f32 %v237, %v248
        %v251 = vand.u32 2147483647, %v250
        %vm252 = vcmp.lt.f32.partialorder %v251, 1.0
        %v253 = vmul.f32 %v251, 0.5
        %v254 = vmul.f32 %v253, %v251
        %v255 = vsub.f32 %v251, 0.5
        %v256 = vsel %vm252, %v254, %v255
        %vm257 = vcmask 1043456
        %v258 = vsel %vm257, %v256, 0.0
        %v259 = vrot.slane %v258, 4
        %v260 = vadd.f32 %v258, %v259
        %v261 = vrot.slane %v260, 2
        %v262 = vadd.f32 %v260, %v261
        %v263 = vrot.slane %v262, 1
        %v264 = vadd.f32 %v262, %v263
        %v265 = vmul.f32 %v264, %v242
        %v266 = vsel %vm243, %v265, 0.0
        %267 = vadd.xlane.f32.xlu0 %v266
        %v268 = vpop.xlane.xlu0 %267
        %v269 = vrot.slane %v268, 4
        %v270 = vadd.f32 %v268, %v269
        %v271 = vrot.slane %v270, 2
        %v272 = vadd.f32 %v270, %v271
        %v273 = vrot.slane %v272, 1
        %v274 = vadd.f32 %v272, %v273
        %s275 = vtos %v274
        %v276 = vlaneseq
        %v277 = vshrl.u32 %v276, 7
        %v278 = vlaneseq
        %v279 = vshrl.u32 %v278, 7
        %v280 = vsub.s32 0, %v279
        %v281 = vrot.slane %v239, %v280
        %vm282 = vcmp.eq.s32.totalorder %v277, %v281
        %v283 = vsel %vm282, %v238, 0.0
        %v284 = vrot.slane %v283, 4
        %v285 = vadd.f32 %v283, %v284
        %v286 = vrot.slane %v285, 2
        %v287 = vadd.f32 %v285, %v286
        %v288 = vrot.slane %v287, 1
        %v289 = vadd.f32 %v287, %v288
        %v290 = vrot.slane %v238, 4
        %v291 = vmax.f32 %v238, %v290
        %v292 = vrot.slane %v291, 2
        %v293 = vmax.f32 %v291, %v292
        %v294 = vrot.slane %v293, 1
        %v295 = vmax.f32 %v293, %v294
        %v296 = vsub.f32 %v238, %v295
        %v297 = vmul.f32 %v296, 1.442695
        %v298 = vpow.pop %v297
        %v299 = vrot.slane %v298, 4
        %v300 = vadd.f32 %v298, %v299
        %v301 = vrot.slane %v300, 2
        %v302 = vadd.f32 %v300, %v301
        %v303 = vrot.slane %v302, 1
        %v304 = vadd.f32 %v302, %v303
        %v305 = vlog2.pop %v304
        %v306 = vmul.f32 %v305, 0.6931472
        %v307 = vadd.f32 %v295, %v306
        %v308 = vsub.f32 %v307, %v289
        %v309 = vsel %vm240, 0.0, %v308
        %v311 = vmul.f32 %v246, 3.0
        %v312 = vmin.f32 %v311, 127.0
        %vm313 = vcmp.ge.s32.totalorder %v309, 1073741824
        %v314 = vsel %vm313, 1, 0
        %v315 = vcvt.s32.f32 %v314
        %v316 = vsel %vm243, %v315, 0.0
        %317 = vadd.xlane.f32.xlu0 %v316
        %v318 = vpop.xlane.xlu0 %317
        %vm319 = vcmp.ge.f32.partialorder %v318, %v312
        %v320 = vsel %vm319, 1073741824, 0
        %v321 = vor.u32 %v320, 536870912
        %vm322 = vcmp.ge.s32.totalorder %v309, %v321
        %v323 = vsel %vm322, 1, 0
        %v324 = vcvt.s32.f32 %v323
        %v325 = vsel %vm243, %v324, 0.0
        %326 = vadd.xlane.f32.xlu0 %v325
        %v327 = vpop.xlane.xlu0 %326
        %vm328 = vcmp.ge.f32.partialorder %v327, %v312
        %v329 = vsel %vm328, %v321, %v320
        %v330 = vor.u32 %v329, 268435456
        %vm331 = vcmp.ge.s32.totalorder %v309, %v330
        %v332 = vsel %vm331, 1, 0
        %v333 = vcvt.s32.f32 %v332
        %v334 = vsel %vm243, %v333, 0.0
        %335 = vadd.xlane.f32.xlu0 %v334
        %v336 = vpop.xlane.xlu0 %335
        %vm337 = vcmp.ge.f32.partialorder %v336, %v312
        %v338 = vsel %vm337, %v330, %v329
        %v339 = vor.u32 %v338, 134217728
        %vm340 = vcmp.ge.s32.totalorder %v309, %v339
        %v341 = vsel %vm340, 1, 0
        %v342 = vcvt.s32.f32 %v341
        %v343 = vsel %vm243, %v342, 0.0
        %344 = vadd.xlane.f32.xlu0 %v343
        %v345 = vpop.xlane.xlu0 %344
        %vm346 = vcmp.ge.f32.partialorder %v345, %v312
        %v347 = vsel %vm346, %v339, %v338
        %v348 = vor.u32 %v347, 67108864
        %vm349 = vcmp.ge.s32.totalorder %v309, %v348
        %v350 = vsel %vm349, 1, 0
        %v351 = vcvt.s32.f32 %v350
        %v352 = vsel %vm243, %v351, 0.0
        %353 = vadd.xlane.f32.xlu0 %v352
        %v354 = vpop.xlane.xlu0 %353
        %vm355 = vcmp.ge.f32.partialorder %v354, %v312
        %v356 = vsel %vm355, %v348, %v347
        %v357 = vor.u32 %v356, 33554432
        %vm358 = vcmp.ge.s32.totalorder %v309, %v357
        %v359 = vsel %vm358, 1, 0
        %v360 = vcvt.s32.f32 %v359
        %v361 = vsel %vm243, %v360, 0.0
        %362 = vadd.xlane.f32.xlu0 %v361
        %v363 = vpop.xlane.xlu0 %362
        %vm364 = vcmp.ge.f32.partialorder %v363, %v312
        %v365 = vsel %vm364, %v357, %v356
        %v366 = vor.u32 %v365, 16777216
        %vm367 = vcmp.ge.s32.totalorder %v309, %v366
        %v368 = vsel %vm367, 1, 0
        %v369 = vcvt.s32.f32 %v368
        %v370 = vsel %vm243, %v369, 0.0
        %371 = vadd.xlane.f32.xlu0 %v370
        %v372 = vpop.xlane.xlu0 %371
        %vm373 = vcmp.ge.f32.partialorder %v372, %v312
        %v374 = vsel %vm373, %v366, %v365
        %v375 = vor.u32 %v374, 8388608
        %vm376 = vcmp.ge.s32.totalorder %v309, %v375
        %v377 = vsel %vm376, 1, 0
        %v378 = vcvt.s32.f32 %v377
        %v379 = vsel %vm243, %v378, 0.0
        %380 = vadd.xlane.f32.xlu0 %v379
        %v381 = vpop.xlane.xlu0 %380
        %vm382 = vcmp.ge.f32.partialorder %v381, %v312
        %v383 = vsel %vm382, %v375, %v374
        %v384 = vor.u32 %v383, 4194304
        %vm385 = vcmp.ge.s32.totalorder %v309, %v384
        %v386 = vsel %vm385, 1, 0
        %v387 = vcvt.s32.f32 %v386
        %v388 = vsel %vm243, %v387, 0.0
        %389 = vadd.xlane.f32.xlu0 %v388
        %v390 = vpop.xlane.xlu0 %389
        %vm391 = vcmp.ge.f32.partialorder %v390, %v312
        %v392 = vsel %vm391, %v384, %v383
        %v393 = vor.u32 %v392, 2097152
        %vm394 = vcmp.ge.s32.totalorder %v309, %v393
        %v395 = vsel %vm394, 1, 0
        %v396 = vcvt.s32.f32 %v395
        %v397 = vsel %vm243, %v396, 0.0
        %398 = vadd.xlane.f32.xlu0 %v397
        %v399 = vpop.xlane.xlu0 %398
        %vm400 = vcmp.ge.f32.partialorder %v399, %v312
        %v401 = vsel %vm400, %v393, %v392
        %v402 = vor.u32 %v401, 1048576
        %vm403 = vcmp.ge.s32.totalorder %v309, %v402
        %v404 = vsel %vm403, 1, 0
        %v405 = vcvt.s32.f32 %v404
        %v406 = vsel %vm243, %v405, 0.0
        %407 = vadd.xlane.f32.xlu0 %v406
        %v408 = vpop.xlane.xlu0 %407
        %vm409 = vcmp.ge.f32.partialorder %v408, %v312
        %v410 = vsel %vm409, %v402, %v401
        %v411 = vor.u32 %v410, 524288
        %vm412 = vcmp.ge.s32.totalorder %v309, %v411
        %v413 = vsel %vm412, 1, 0
        %v414 = vcvt.s32.f32 %v413
        %v415 = vsel %vm243, %v414, 0.0
        %416 = vadd.xlane.f32.xlu0 %v415
        %v417 = vpop.xlane.xlu0 %416
        %vm418 = vcmp.ge.f32.partialorder %v417, %v312
        %v419 = vsel %vm418, %v411, %v410
        %v420 = vor.u32 %v419, 262144
        %vm421 = vcmp.ge.s32.totalorder %v309, %v420
        %v422 = vsel %vm421, 1, 0
        %v423 = vcvt.s32.f32 %v422
        %v424 = vsel %vm243, %v423, 0.0
        %425 = vadd.xlane.f32.xlu0 %v424
        %v426 = vpop.xlane.xlu0 %425
        %vm427 = vcmp.ge.f32.partialorder %v426, %v312
        %v428 = vsel %vm427, %v420, %v419
        %v429 = vor.u32 %v428, 131072
        %vm430 = vcmp.ge.s32.totalorder %v309, %v429
        %v431 = vsel %vm430, 1, 0
        %v432 = vcvt.s32.f32 %v431
        %v433 = vsel %vm243, %v432, 0.0
        %434 = vadd.xlane.f32.xlu0 %v433
        %v435 = vpop.xlane.xlu0 %434
        %vm436 = vcmp.ge.f32.partialorder %v435, %v312
        %v437 = vsel %vm436, %v429, %v428
        %v438 = vor.u32 %v437, 65536
        %vm439 = vcmp.ge.s32.totalorder %v309, %v438
        %v440 = vsel %vm439, 1, 0
        %v441 = vcvt.s32.f32 %v440
        %v442 = vsel %vm243, %v441, 0.0
        %443 = vadd.xlane.f32.xlu0 %v442
        %v444 = vpop.xlane.xlu0 %443
        %vm445 = vcmp.ge.f32.partialorder %v444, %v312
        %v446 = vsel %vm445, %v438, %v437
        %v447 = vor.u32 %v446, 32768
        %vm448 = vcmp.ge.s32.totalorder %v309, %v447
        %v449 = vsel %vm448, 1, 0
        %v450 = vcvt.s32.f32 %v449
        %v451 = vsel %vm243, %v450, 0.0
        %452 = vadd.xlane.f32.xlu0 %v451
        %v453 = vpop.xlane.xlu0 %452
        %vm454 = vcmp.ge.f32.partialorder %v453, %v312
        %v455 = vsel %vm454, %v447, %v446
        %v456 = vor.u32 %v455, 16384
        %vm457 = vcmp.ge.s32.totalorder %v309, %v456
        %v458 = vsel %vm457, 1, 0
        %v459 = vcvt.s32.f32 %v458
        %v460 = vsel %vm243, %v459, 0.0
        %461 = vadd.xlane.f32.xlu0 %v460
        %v462 = vpop.xlane.xlu0 %461
        %vm463 = vcmp.ge.f32.partialorder %v462, %v312
        %v464 = vsel %vm463, %v456, %v455
        %v465 = vor.u32 %v464, 8192
        %vm466 = vcmp.ge.s32.totalorder %v309, %v465
        %v467 = vsel %vm466, 1, 0
        %v468 = vcvt.s32.f32 %v467
        %v469 = vsel %vm243, %v468, 0.0
        %470 = vadd.xlane.f32.xlu0 %v469
        %v471 = vpop.xlane.xlu0 %470
        %vm472 = vcmp.ge.f32.partialorder %v471, %v312
        %v473 = vsel %vm472, %v465, %v464
        %v474 = vor.u32 %v473, 4096
        %vm475 = vcmp.ge.s32.totalorder %v309, %v474
        %v476 = vsel %vm475, 1, 0
        %v477 = vcvt.s32.f32 %v476
        %v478 = vsel %vm243, %v477, 0.0
        %479 = vadd.xlane.f32.xlu0 %v478
        %v480 = vpop.xlane.xlu0 %479
        %vm481 = vcmp.ge.f32.partialorder %v480, %v312
        %v482 = vsel %vm481, %v474, %v473
        %v483 = vor.u32 %v482, 2048
        %vm484 = vcmp.ge.s32.totalorder %v309, %v483
        %v485 = vsel %vm484, 1, 0
        %v486 = vcvt.s32.f32 %v485
        %v487 = vsel %vm243, %v486, 0.0
        %488 = vadd.xlane.f32.xlu0 %v487
        %v489 = vpop.xlane.xlu0 %488
        %vm490 = vcmp.ge.f32.partialorder %v489, %v312
        %v491 = vsel %vm490, %v483, %v482
        %v492 = vor.u32 %v491, 1024
        %vm493 = vcmp.ge.s32.totalorder %v309, %v492
        %v494 = vsel %vm493, 1, 0
        %v495 = vcvt.s32.f32 %v494
        %v496 = vsel %vm243, %v495, 0.0
        %497 = vadd.xlane.f32.xlu0 %v496
        %v498 = vpop.xlane.xlu0 %497
        %vm499 = vcmp.ge.f32.partialorder %v498, %v312
        %v500 = vsel %vm499, %v492, %v491
        %v501 = vor.u32 %v500, 512
        %vm502 = vcmp.ge.s32.totalorder %v309, %v501
        %v503 = vsel %vm502, 1, 0
        %v504 = vcvt.s32.f32 %v503
        %v505 = vsel %vm243, %v504, 0.0
        %506 = vadd.xlane.f32.xlu0 %v505
        %v507 = vpop.xlane.xlu0 %506
        %vm508 = vcmp.ge.f32.partialorder %v507, %v312
        %v509 = vsel %vm508, %v501, %v500
        %v510 = vor.u32 %v509, 256
        %vm511 = vcmp.ge.s32.totalorder %v309, %v510
        %v512 = vsel %vm511, 1, 0
        %v513 = vcvt.s32.f32 %v512
        %v514 = vsel %vm243, %v513, 0.0
        %515 = vadd.xlane.f32.xlu0 %v514
        %v516 = vpop.xlane.xlu0 %515
        %vm517 = vcmp.ge.f32.partialorder %v516, %v312
        %v518 = vsel %vm517, %v510, %v509
        %v519 = vor.u32 %v518, 128
        %vm520 = vcmp.ge.s32.totalorder %v309, %v519
        %v521 = vsel %vm520, 1, 0
        %v522 = vcvt.s32.f32 %v521
        %v523 = vsel %vm243, %v522, 0.0
        %524 = vadd.xlane.f32.xlu0 %v523
        %v525 = vpop.xlane.xlu0 %524
        %vm526 = vcmp.ge.f32.partialorder %v525, %v312
        %v527 = vsel %vm526, %v519, %v518
        %v528 = vor.u32 %v527, 64
        %vm529 = vcmp.ge.s32.totalorder %v309, %v528
        %v530 = vsel %vm529, 1, 0
        %v531 = vcvt.s32.f32 %v530
        %v532 = vsel %vm243, %v531, 0.0
        %533 = vadd.xlane.f32.xlu0 %v532
        %v534 = vpop.xlane.xlu0 %533
        %vm535 = vcmp.ge.f32.partialorder %v534, %v312
        %v536 = vsel %vm535, %v528, %v527
        %v537 = vor.u32 %v536, 32
        %vm538 = vcmp.ge.s32.totalorder %v309, %v537
        %v539 = vsel %vm538, 1, 0
        %v540 = vcvt.s32.f32 %v539
        %v541 = vsel %vm243, %v540, 0.0
        %542 = vadd.xlane.f32.xlu0 %v541
        %v543 = vpop.xlane.xlu0 %542
        %vm544 = vcmp.ge.f32.partialorder %v543, %v312
        %v545 = vsel %vm544, %v537, %v536
        %v546 = vor.u32 %v545, 16
        %vm547 = vcmp.ge.s32.totalorder %v309, %v546
        %v548 = vsel %vm547, 1, 0
        %v549 = vcvt.s32.f32 %v548
        %v550 = vsel %vm243, %v549, 0.0
        %551 = vadd.xlane.f32.xlu0 %v550
        %v552 = vpop.xlane.xlu0 %551
        %vm553 = vcmp.ge.f32.partialorder %v552, %v312
        %v554 = vsel %vm553, %v546, %v545
        %v555 = vor.u32 %v554, 8
        %vm556 = vcmp.ge.s32.totalorder %v309, %v555
        %v557 = vsel %vm556, 1, 0
        %v558 = vcvt.s32.f32 %v557
        %v559 = vsel %vm243, %v558, 0.0
        %560 = vadd.xlane.f32.xlu0 %v559
        %v561 = vpop.xlane.xlu0 %560
        %vm562 = vcmp.ge.f32.partialorder %v561, %v312
        %v563 = vsel %vm562, %v555, %v554
        %v564 = vor.u32 %v563, 4
        %vm565 = vcmp.ge.s32.totalorder %v309, %v564
        %v566 = vsel %vm565, 1, 0
        %v567 = vcvt.s32.f32 %v566
        %v568 = vsel %vm243, %v567, 0.0
        %569 = vadd.xlane.f32.xlu0 %v568
        %v570 = vpop.xlane.xlu0 %569
        %vm571 = vcmp.ge.f32.partialorder %v570, %v312
        %v572 = vsel %vm571, %v564, %v563
        %v573 = vor.u32 %v572, 2
        %vm574 = vcmp.ge.s32.totalorder %v309, %v573
        %v575 = vsel %vm574, 1, 0
        %v576 = vcvt.s32.f32 %v575
        %v577 = vsel %vm243, %v576, 0.0
        %578 = vadd.xlane.f32.xlu0 %v577
        %v579 = vpop.xlane.xlu0 %578
        %vm580 = vcmp.ge.f32.partialorder %v579, %v312
        %v581 = vsel %vm580, %v573, %v572
        %v582 = vor.u32 %v581, 1
        %vm583 = vcmp.ge.s32.totalorder %v309, %v582
        %v584 = vsel %vm583, 1, 0
        %v585 = vcvt.s32.f32 %v584
        %v586 = vsel %vm243, %v585, 0.0
        %587 = vadd.xlane.f32.xlu0 %v586
        %v588 = vpop.xlane.xlu0 %587
        %vm589 = vcmp.ge.f32.partialorder %v588, %v312
        %v590 = vsel %vm589, %v582, %v581
        %vm591 = vcmp.ge.s32.totalorder %v309, %v590
        %vm592 = vmor %vm240, %vm591
        %v593 = vsel %vm592, %v308, 0.0
        %v594 = vsel %vm243, %v593, 0.0
        %595 = vadd.xlane.f32.xlu0 %v594
        %v596 = vpop.xlane.xlu0 %595
        %v597 = vrot.slane %v596, 4
        %v598 = vadd.f32 %v596, %v597
        %v599 = vrot.slane %v598, 2
        %v600 = vadd.f32 %v598, %v599
        %v601 = vrot.slane %v600, 1
        %v602 = vadd.f32 %v600, %v601
        %s603 = vtos %v602
        %v604 = vadd.f32 %v246, 0.0
        %s605 = vtos %v604
        %vm606 = vcmp.eq.s32.totalorder %v277, 0
        %vm607 = vcmp.eq.s32.totalorder %v277, 1
        %vm608 = vcmp.eq.s32.totalorder %v277, 2
        %v609 = vstv %s605
        %v610 = vsel %vm608, %v609, 0.0
        %v611 = vstv %s603
        %v612 = vsel %vm607, %v611, %v610
        %v613 = vstv %s275
        %v614 = vsel %vm606, %v613, %v612
        %615 = vst [vmem:[%s233] sm:$0xff] %v614
        %s616 = sand.u32 %s109, 1
        %s617 = scalar_lea.sflag [#allocation4], %s616
        %s618 = sand.u32 %s109, 1
        %s619 = smul.addr %s618, 8
        %s620 = scalar_lea.vmem [#allocation7], %s619
        // Predicated region
        $region41: #{tpu_custom_call.1} parent=31 // pred_check
          %p621 = pneg %p119
        $region42: #{tpu_custom_call.1} parent=31 // pred_check_branch
          %623 = sbr.rel (%p621) target = $region44
        $region43: #{tpu_custom_call.1} parent=31 // pred_region
          %s625 = ssub.s32 128, 128
          %626 = vsyncadd %s617, %s625
          %s627 = smul.addr %s23, 128
          %s628 = scalar_lea.hbm %s3, %s627
          %s630 = sshll.u32 %s620, 4
          %s631 = int_to_ptr.vmem [resolvable:$true] %s630
          %633 = dma.vmem_to_hbm [thread:$0]  %s631, 128, %s628, %s617
        $region44: #{tpu_custom_call.1} parent=31 // pred_fallthru
          _
      $region32: #{tpu_custom_call.1} parent=5 // pred_fallthru
        _
      %p634 = scmp.le.s32.totalorder 2, %s18
      // Predicated region
      $region45: #{tpu_custom_call.1} parent=5 // pred_check
        %p635 = pneg %p634
      $region46: #{tpu_custom_call.1} parent=5 // pred_check_branch
        %637 = sbr.rel (%p635) target = $region48
      $region47: #{tpu_custom_call.1} parent=5 // pred_region
        %s638 = ssub.s32 %s18, 2
        // Predicated region
        $region49: #{tpu_custom_call.1} parent=47 // pred_check
          %p639 = pneg %p125
        $region50: #{tpu_custom_call.1} parent=47 // pred_check_branch
          %641 = sbr.rel (%p639) target = $region52
        $region51: #{tpu_custom_call.1} parent=47 // pred_region
          %s642 = sand.u32 %s110, 1
          %s643 = scalar_lea.sflag [#allocation4], %s642
          %s644 = sand.u32 %s110, 1
          %s645 = smul.addr %s644, 8
          %s646 = scalar_lea.vmem [#allocation7], %s645
          %647 = dma.done %s643, 128
        $region52: #{tpu_custom_call.1} parent=47 // pred_fallthru
          _
      $region48: #{tpu_custom_call.1} parent=5 // pred_fallthru
        _
    $region6: #{tpu_custom_call.1} parent=1 // loop_footer
      %s22 = sadd.s32 1, %s18
    $region7: #{tpu_custom_call.1} parent=1 // loop_footer_branch
      %17 = sbr.rel target = $region3
    $region8: #{tpu_custom_call.1} parent=1 // loop_exit
      _
    %648 = vsyncpa [#allocation3], 1
    %s649 = scalar_lea.sflag [#allocation3], 1
    %650 = vsyncpa %s649, 1
    %651 = vsyncpa [#allocation6], 1
    %s652 = scalar_lea.sflag [#allocation6], 1
    %653 = vsyncpa %s652, 1
    %654 = vsyncpa [#allocation4], 1
    %s655 = scalar_lea.sflag [#allocation4], 1
    %656 = vsyncpa %s655, 1

</llo_original>
